<compile_context>
chip_gen: v7x
topology: tpu7x:2x2x1
jax: 0.10.0
libtpu: 0.0.40
codegen_flags: <defaults>
</compile_context>

<pallas_src>
import math

import jax
import jax.numpy as jnp
from jax.experimental import pallas as pl
from jax.experimental.pallas import tpu as pltpu

TAU_U = 0.9      # LIF leak; multiplies the persistent membrane, which is zero at reset
V_TH = 1.0
BN_EPS = 1e-5
KSIZE = 3
PAD = 1
LANES = 128


# ----------------------------- Pallas kernel ------------------------------ #
def _make_kernel(Hp, Mrows, K1, N):
    def kernel(x_ref, w_ref, thr_ref, out_ref, lhs_ref):
        # x_ref:   (1, 1, (Dt+2)*Hp + 2, K1)  padded channels-last input tile (halo), bf16
        # w_ref:   (9*K1, N)                  banded conv weights, BN scale folded, bf16
        # thr_ref: (1, N)                     v_th - (conv bias + BN shift), f32
        # out_ref: (1, Mrows, N)              spikes for this (batch, depth tile), bf16
        # lhs_ref: (Mrows, 9*K1)              VMEM scratch: K-concatenated tap slices, bf16
        xv = x_ref[0, 0]                                      # (Rt, K1) bf16
        for kd in range(KSIZE):
            for kh in range(KSIZE):
                tap = kd * KSIZE + kh
                off = kd * Hp + kh                            # static sublane offset
                lhs_ref[:, tap * K1:(tap + 1) * K1] = xv[off:off + Mrows, :]
        # single banded GEMM, K = 9*K1; accumulation stays inside the MXU (f32 result)
        acc = jnp.dot(lhs_ref[...], w_ref[...], preferred_element_type=jnp.float32)
        # LIF threshold folded into thr_ref: spike <=> scale*conv >= v_th - shift
        out_ref[0] = (acc >= thr_ref[...]).astype(out_ref.dtype)

    return kernel


def _run_pallas(tiles, big_w, thr_row, *, Hp, Mrows, K1, N):
    B, T, Rt, _ = tiles.shape
    kernel = _make_kernel(Hp, Mrows, K1, N)

    # VMEM budget derived from the actual buffers: double-buffered blocks + scratch
    # + headroom for compiler temporaries.
    block_bytes = (Rt * K1 * 2) + (big_w.size * 2) + (N * 4) + (Mrows * N * 2)
    scratch_bytes = Mrows * KSIZE * KSIZE * K1 * 2
    vmem_limit = min(2 * block_bytes + scratch_bytes + (8 << 20), 48 << 20)

    return pl.pallas_call(
        kernel,
        out_shape=jax.ShapeDtypeStruct((B, T * Mrows, N), jnp.bfloat16),
        grid=(B, T),
        in_specs=[
            pl.BlockSpec((1, 1, Rt, K1), lambda b, t: (b, t, 0, 0)),
            pl.BlockSpec(big_w.shape, lambda b, t: (0, 0)),   # grid-invariant: DMAed once
            pl.BlockSpec((1, N), lambda b, t: (0, 0)),        # grid-invariant: DMAed once
        ],
        out_specs=pl.BlockSpec((1, Mrows, N), lambda b, t: (b, t, 0)),
        scratch_shapes=[pltpu.VMEM((Mrows, KSIZE * KSIZE * K1), jnp.bfloat16)],
        compiler_params=pltpu.CompilerParams(
            dimension_semantics=("parallel", "parallel"),
            vmem_limit_bytes=int(vmem_limit),
        ),
    )(tiles, big_w, thr_row)


# ------------------------------- JAX glue ---------------------------------- #
def _fold_bn(params):
    inv_std = jax.lax.rsqrt(params["running_var"] + BN_EPS)
    scale = params["gamma"] * inv_std
    shift = (params["bias"] - params["running_mean"]) * scale + params["beta"]
    return scale, shift


def _round_up(x, m):
    return ((x + m - 1) // m) * m


def _pick_depth_tile(D, Hp, K1, max_scratch_bytes=4 << 20):
    """Largest depth tile with >=2 grid steps (when possible), 8-aligned GEMM rows and a
    bounded LHS scratch; falls back to the whole depth (block == full array dim)."""
    divisors = [d for d in range(1, D + 1) if D % d == 0]
    ok = [d for d in divisors
          if (d * Hp) % 8 == 0
          and d * Hp * KSIZE * KSIZE * K1 * 2 <= max_scratch_bytes]
    multi = [d for d in ok if D // d >= 2]
    if multi:
        return max(multi)
    if ok:
        return max(ok)
    return D


def init_params(key, cin, cout, k=KSIZE):
    kw_, kb, kg, kbeta, kmean, kvar = jax.random.split(key, 6)
    fan_in = cin * k ** 3
    bound = 1.0 / jnp.sqrt(float(fan_in))
    weight = jax.random.uniform(kw_, (cout, cin, k, k, k), jnp.float32, -bound, bound)
    bias = jax.random.uniform(kb, (cout,), jnp.float32, -bound, bound)
    gamma = jax.random.uniform(kg, (cout,), jnp.float32, 0.5, 1.5)
    beta = jax.random.uniform(kbeta, (cout,), jnp.float32, -0.1, 0.1)
    running_mean = jax.random.uniform(kmean, (cout,), jnp.float32, -0.1, 0.1)
    running_var = jax.random.uniform(kvar, (cout,), jnp.float32, 0.5, 1.5)
    return dict(weight=weight, bias=bias, gamma=gamma, beta=beta,
                running_mean=running_mean, running_var=running_var)


@jax.jit
def spiking_conv3d_forward(x_ncdhw, params):
    """Forward pass. x: [B, Cin, D, H, W] -> spikes [B, Cout, D, H, W] (values in {0,1})."""
    B, Cin, D, H, W = x_ncdhw.shape
    weight = params["weight"]                                    # [Cout, Cin, 3, 3, 3]
    Cout = weight.shape[0]
    Dp, Hp, Wp = D + 2 * PAD, H + 2 * PAD, W + 2 * PAD

    # minimal Cout padding keeping the output lane-dense: (W * Cout_pad) % 128 == 0
    cmul = LANES // math.gcd(W, LANES)
    Cout_pad = _round_up(Cout, cmul)
    N = W * Cout_pad

    # lane-pad the slab width so in-kernel tap copies / the MXU LHS feed are 128-aligned
    WpCin = Wp * Cin
    K1 = _round_up(WpCin, LANES)

    Dt = _pick_depth_tile(D, Hp, K1)
    T = D // Dt
    Mrows = Dt * Hp                    # GEMM rows per tile (incl. 2 junk h-pad rows/plane)

    # fold conv bias + eval-mode BN; scale into the weights, shift into the threshold
    scale, shift = _fold_bn(params)
    w_folded = weight * scale[:, None, None, None, None]         # f32

    # banded GEMM weights:
    #   big_w[(kd*3+kh)*K1 + w'*Cin + ci, w*Cout_pad + co] = w_folded[co, ci, kd, kh, w'-w]
    #   (zero unless 0 <= w'-w < 3), so the kw taps are handled inside the matmul.
    sel = jnp.stack([jnp.eye(Wp, W, k=-kw, dtype=jnp.float32) for kw in range(KSIZE)], 0)
    w_perm = jnp.transpose(w_folded, (2, 3, 4, 1, 0))            # [kd, kh, kw, Cin, Cout]
    big_w = jnp.einsum("kxw,dhkcf->dhxcwf", sel, w_perm)         # [3,3,Wp,Cin,W,Cout]
    big_w = jnp.pad(big_w, ((0, 0),) * 5 + ((0, Cout_pad - Cout),))
    big_w = big_w.reshape(KSIZE * KSIZE, WpCin, N)
    big_w = jnp.pad(big_w, ((0, 0), (0, K1 - WpCin), (0, 0)))
    big_w = big_w.reshape(KSIZE * KSIZE * K1, N).astype(jnp.bfloat16)

    # LIF threshold with the folded shift: spike <=> scale*conv >= v_th - shift
    thr = jnp.pad(V_TH - shift, (0, Cout_pad - Cout), constant_values=V_TH)
    thr_row = jnp.tile(thr, W).reshape(1, N).astype(jnp.float32)

    # channels-last, spatially zero-padded input, one 2-D slab per batch; +2 overrun
    # rows cover the deepest tap offsets, lanes zero-padded to K1.
    xt = jnp.transpose(x_ncdhw, (0, 2, 3, 4, 1))                 # [B, D, H, W, Cin]
    xpad = jnp.pad(xt, ((0, 0), (PAD, PAD), (PAD, PAD), (PAD, PAD), (0, 0)))
    slab = xpad.reshape(B, Dp * Hp, WpCin)
    slab = jnp.pad(slab, ((0, 0), (0, KSIZE - 1), (0, K1 - WpCin))).astype(jnp.bfloat16)

    # materialize depth tiles with a 1-plane halo so all in-kernel offsets are static
    Rt = (Dt + 2) * Hp + (KSIZE - 1)
    tiles = jnp.stack(
        [slab[:, t * Dt * Hp: t * Dt * Hp + Rt, :] for t in range(T)], axis=1)

    out = _run_pallas(tiles, big_w, thr_row, Hp=Hp, Mrows=Mrows, K1=K1, N=N)
    # out: [B, D*Hp, W*Cout_pad]; rows with h >= H and channels >= Cout are junk.
    spikes = out.reshape(B, D, Hp, W, Cout_pad)[:, :, :H, :, :Cout]
    # slice/transpose in bf16 (spikes are exactly 0/1), single f32 cast at the end
    return jnp.transpose(spikes, (0, 4, 1, 2, 3)).astype(jnp.float32)   # NCDHW


# ------------------------------ references --------------------------------- #
def reference_forward(x_ncdhw, params):
    """Numerically matched reference: same bf16-rounded folded weights, f32 accumulation
    and threshold-side folding as the kernel (only the reduction order differs)."""
    scale, shift = _fold_bn(params)
    w_folded = (params["weight"] * scale[:, None, None, None, None]).astype(jnp.bfloat16)
    conv = jax.lax.conv_general_dilated(
        x_ncdhw.astype(jnp.bfloat16), w_folded,
        window_strides=(1, 1, 1), padding=((PAD, PAD),) * 3,
        dimension_numbers=("NCDHW", "OIDHW", "NCDHW"),
        preferred_element_type=jnp.float32)
    thr = (V_TH - shift)[None, :, None, None, None]              # u_prev == 0
    return (conv >= thr).astype(jnp.float32)


def reference_forward_f32(x_ncdhw, params):
    conv = jax.lax.conv_general_dilated(
        x_ncdhw, params["weight"], window_strides=(1, 1, 1),
        padding=((PAD, PAD),) * 3,
        dimension_numbers=("NCDHW", "OIDHW", "NCDHW"))
    conv = conv + params["bias"][None, :, None, None, None]
    inv_std = jax.lax.rsqrt(params["running_var"] + BN_EPS)
    y = ((conv - params["running_mean"][None, :, None, None, None])
         * (params["gamma"] * inv_std)[None, :, None, None, None]
         + params["beta"][None, :, None, None, None])
    u = TAU_U * 0.0 + y
    return (u >= V_TH).astype(jnp.float32)


if __name__ == "__main__":
    key = jax.random.PRNGKey(0)
    k_x, k_p = jax.random.split(key)

    B, Cin, Cout, D, H, W = 2, 4, 8, 8, 8, 8
    # input "spike" tensor (binary), scaled so some outputs cross v_th
    x = (jax.random.uniform(k_x, (B, Cin, D, H, W), jnp.float32) > 0.5).astype(
        jnp.float32) * 3.0
    params = init_params(k_p, Cin, Cout)

    spikes = spiking_conv3d_forward(x, params)
    spikes = jax.block_until_ready(spikes)
    assert spikes.shape == (B, Cout, D, H, W)

    # Tight check against the numerically matched (bf16 folded weights, f32 acc) reference.
    ref = reference_forward(x, params)
    flip = float(jnp.mean(jnp.abs(spikes - ref)))
    if flip > 1e-3:
        raise AssertionError(f"spike flip fraction vs matched reference: {flip}")

    # Threshold-sensitivity sanity check vs the full-f32 reference: only outputs sitting
    # essentially at u == v_th may flip due to bf16 weight quantization.
    ref32 = reference_forward_f32(x, params)
    flip32 = float(jnp.mean(jnp.abs(spikes - ref32)))
    if flip32 > 0.05:
        raise AssertionError(f"spike flip fraction vs f32 reference: {flip32}")

    print("KERNEL_OK")
</pallas_src>

<mosaic_0001>
module attributes {stable_mosaic.version = 11 : i64} {
  func.func @kernel(%arg0: i32, %arg1: i32, %arg2: memref<1x1x62x128xbf16, #tpu.memory_space<vmem>>, %arg3: memref<1152x128xbf16, #tpu.memory_space<vmem>>, %arg4: memref<1x128xf32, #tpu.memory_space<vmem>>, %arg5: memref<1x40x128xbf16, #tpu.memory_space<vmem>>, %arg6: memref<40x1152xbf16, #tpu.memory_space<vmem>>) attributes {dimension_semantics = [#tpu.dimension_semantics<parallel>, #tpu.dimension_semantics<parallel>], iteration_bounds = array<i64: 2, 2>, scalar_prefetch = 0 : i64, scratch_operands = 1 : i64, tpu.core_type = #tpu.core_type<tc>, window_params = [{transform_indices = @transform_0, window_bounds = array<i64: 1, 1, 62, 128>}, {pipeline_mode = #tpu.pipeline_mode<synchronous>, transform_indices = @transform_1, window_bounds = array<i64: 1152, 128>}, {pipeline_mode = #tpu.pipeline_mode<synchronous>, transform_indices = @transform_2, window_bounds = array<i64: 1, 128>}, {transform_indices = @transform_3, window_bounds = array<i64: 1, 40, 128>}]} {
    %c0 = arith.constant 0 : index
    %c0_0 = arith.constant 0 : index
    %c0_1 = arith.constant 0 : index
    %c0_2 = arith.constant 0 : index
    %0 = vector.load %arg2[%c0, %c0_0, %c0_1, %c0_2] : memref<1x1x62x128xbf16, #tpu.memory_space<vmem>>, vector<1x1x62x128xbf16>
    %1 = vector.shape_cast %0 : vector<1x1x62x128xbf16> to vector<62x128xbf16>
    %2 = vector.extract_strided_slice %1 {offsets = [0, 0], sizes = [40, 128], strides = [1, 1]} : vector<62x128xbf16> to vector<40x128xbf16>
    %c0_3 = arith.constant 0 : index
    %c0_4 = arith.constant 0 : index
    %3 = vector.load %arg6[%c0_3, %c0_4] : memref<40x1152xbf16, #tpu.memory_space<vmem>>, vector<40x128xbf16>
    tpu.vector_store %arg6[%c0_3, %c0_4], %2 {strides = array<i32>} : memref<40x1152xbf16, #tpu.memory_space<vmem>>, vector<40x128xbf16>,
    %4 = vector.extract_strided_slice %1 {offsets = [1, 0], sizes = [40, 128], strides = [1, 1]} : vector<62x128xbf16> to vector<40x128xbf16>
    %c0_5 = arith.constant 0 : index
    %c128 = arith.constant 128 : index
    %5 = vector.load %arg6[%c0_5, %c128] : memref<40x1152xbf16, #tpu.memory_space<vmem>>, vector<40x128xbf16>
    tpu.vector_store %arg6[%c0_5, %c128], %4 {strides = array<i32>} : memref<40x1152xbf16, #tpu.memory_space<vmem>>, vector<40x128xbf16>,
    %6 = vector.extract_strided_slice %1 {offsets = [2, 0], sizes = [40, 128], strides = [1, 1]} : vector<62x128xbf16> to vector<40x128xbf16>
    %c0_6 = arith.constant 0 : index
    %c256 = arith.constant 256 : index
    %7 = vector.load %arg6[%c0_6, %c256] : memref<40x1152xbf16, #tpu.memory_space<vmem>>, vector<40x128xbf16>
    tpu.vector_store %arg6[%c0_6, %c256], %6 {strides = array<i32>} : memref<40x1152xbf16, #tpu.memory_space<vmem>>, vector<40x128xbf16>,
    %8 = vector.extract_strided_slice %1 {offsets = [10, 0], sizes = [40, 128], strides = [1, 1]} : vector<62x128xbf16> to vector<40x128xbf16>
    %c0_7 = arith.constant 0 : index
    %c384 = arith.constant 384 : index
    %9 = vector.load %arg6[%c0_7, %c384] : memref<40x1152xbf16, #tpu.memory_space<vmem>>, vector<40x128xbf16>
    tpu.vector_store %arg6[%c0_7, %c384], %8 {strides = array<i32>} : memref<40x1152xbf16, #tpu.memory_space<vmem>>, vector<40x128xbf16>,
    %10 = vector.extract_strided_slice %1 {offsets = [11, 0], sizes = [40, 128], strides = [1, 1]} : vector<62x128xbf16> to vector<40x128xbf16>
    %c0_8 = arith.constant 0 : index
    %c512 = arith.constant 512 : index
    %11 = vector.load %arg6[%c0_8, %c512] : memref<40x1152xbf16, #tpu.memory_space<vmem>>, vector<40x128xbf16>
    tpu.vector_store %arg6[%c0_8, %c512], %10 {strides = array<i32>} : memref<40x1152xbf16, #tpu.memory_space<vmem>>, vector<40x128xbf16>,
    %12 = vector.extract_strided_slice %1 {offsets = [12, 0], sizes = [40, 128], strides = [1, 1]} : vector<62x128xbf16> to vector<40x128xbf16>
    %c0_9 = arith.constant 0 : index
    %c640 = arith.constant 640 : index
    %13 = vector.load %arg6[%c0_9, %c640] : memref<40x1152xbf16, #tpu.memory_space<vmem>>, vector<40x128xbf16>
    tpu.vector_store %arg6[%c0_9, %c640], %12 {strides = array<i32>} : memref<40x1152xbf16, #tpu.memory_space<vmem>>, vector<40x128xbf16>,
    %14 = vector.extract_strided_slice %1 {offsets = [20, 0], sizes = [40, 128], strides = [1, 1]} : vector<62x128xbf16> to vector<40x128xbf16>
    %c0_10 = arith.constant 0 : index
    %c768 = arith.constant 768 : index
    %15 = vector.load %arg6[%c0_10, %c768] : memref<40x1152xbf16, #tpu.memory_space<vmem>>, vector<40x128xbf16>
    tpu.vector_store %arg6[%c0_10, %c768], %14 {strides = array<i32>} : memref<40x1152xbf16, #tpu.memory_space<vmem>>, vector<40x128xbf16>,
    %16 = vector.extract_strided_slice %1 {offsets = [21, 0], sizes = [40, 128], strides = [1, 1]} : vector<62x128xbf16> to vector<40x128xbf16>
    %c0_11 = arith.constant 0 : index
    %c896 = arith.constant 896 : index
    %17 = vector.load %arg6[%c0_11, %c896] : memref<40x1152xbf16, #tpu.memory_space<vmem>>, vector<40x128xbf16>
    tpu.vector_store %arg6[%c0_11, %c896], %16 {strides = array<i32>} : memref<40x1152xbf16, #tpu.memory_space<vmem>>, vector<40x128xbf16>,
    %18 = vector.extract_strided_slice %1 {offsets = [22, 0], sizes = [40, 128], strides = [1, 1]} : vector<62x128xbf16> to vector<40x128xbf16>
    %c0_12 = arith.constant 0 : index
    %c1024 = arith.constant 1024 : index
    %19 = vector.load %arg6[%c0_12, %c1024] : memref<40x1152xbf16, #tpu.memory_space<vmem>>, vector<40x128xbf16>
    tpu.vector_store %arg6[%c0_12, %c1024], %18 {strides = array<i32>} : memref<40x1152xbf16, #tpu.memory_space<vmem>>, vector<40x128xbf16>,
    %c0_13 = arith.constant 0 : index
    %c0_14 = arith.constant 0 : index
    %20 = vector.load %arg6[%c0_13, %c0_14] : memref<40x1152xbf16, #tpu.memory_space<vmem>>, vector<40x1152xbf16>
    %c0_15 = arith.constant 0 : index
    %c0_16 = arith.constant 0 : index
    %21 = vector.load %arg3[%c0_15, %c0_16] : memref<1152x128xbf16, #tpu.memory_space<vmem>>, vector<1152x128xbf16>
    %cst = arith.constant dense<0.000000e+00> : vector<40x128xf32>
    %22 = tpu.matmul %20, %21, %cst {dimension_numbers = #tpu.dot_dimension_numbers<[1], [0], [0], [1], [0, 0, 1, 1], [], []>} : vector<40x1152xbf16>, vector<1152x128xbf16>, vector<40x128xf32> -> vector<40x128xf32>
    %c0_17 = arith.constant 0 : index
    %c0_18 = arith.constant 0 : index
    %23 = vector.load %arg4[%c0_17, %c0_18] : memref<1x128xf32, #tpu.memory_space<vmem>>, vector<1x128xf32>
    %24 = vector.broadcast %23 : vector<1x128xf32> to vector<40x128xf32>
    %25 = arith.cmpf oge, %22, %24 : vector<40x128xf32>
    %26 = arith.extui %25 : vector<40x128xi1> to vector<40x128xi32>
    %27 = arith.sitofp %26 : vector<40x128xi32> to vector<40x128xf32>
    %28 = arith.truncf %27 : vector<40x128xf32> to vector<40x128xbf16>
    %c0_19 = arith.constant 0 : index
    %c0_20 = arith.constant 0 : index
    %c0_21 = arith.constant 0 : index
    %29 = vector.load %arg5[%c0_19, %c0_20, %c0_21] : memref<1x40x128xbf16, #tpu.memory_space<vmem>>, vector<1x40x128xbf16>
    %30 = vector.shape_cast %29 : vector<1x40x128xbf16> to vector<40x128xbf16>
    %31 = vector.shape_cast %28 : vector<40x128xbf16> to vector<1x40x128xbf16>
    tpu.vector_store %arg5[%c0_19, %c0_20, %c0_21], %31 {strides = array<i32>} : memref<1x40x128xbf16, #tpu.memory_space<vmem>>, vector<1x40x128xbf16>,
    return
  }
  func.func @transform_0(%arg0: i32, %arg1: i32) -> (i32, i32, i32, i32) {
    %c0_i32 = arith.constant 0 : i32
    %c0_i32_0 = arith.constant 0 : i32
    %c0_i32_1 = arith.constant 0 : i32
    return %arg0, %arg1, %c0_i32, %c0_i32_0 : i32, i32, i32, i32
  }
  func.func @transform_1(%arg0: i32, %arg1: i32) -> (i32, i32) {
    %c0_i32 = arith.constant 0 : i32
    %c0_i32_0 = arith.constant 0 : i32
    %c0_i32_1 = arith.constant 0 : i32
    return %c0_i32, %c0_i32_0 : i32, i32
  }
  func.func @transform_2(%arg0: i32, %arg1: i32) -> (i32, i32) {
    %c0_i32 = arith.constant 0 : i32
    %c0_i32_0 = arith.constant 0 : i32
    %c0_i32_1 = arith.constant 0 : i32
    return %c0_i32, %c0_i32_0 : i32, i32
  }
  func.func @transform_3(%arg0: i32, %arg1: i32) -> (i32, i32, i32) {
    %c0_i32 = arith.constant 0 : i32
    %c0_i32_0 = arith.constant 0 : i32
    return %arg0, %arg1, %c0_i32 : i32, i32, i32
  }
}

</mosaic_0001>

<llo_original>
// kernel: tile.8
$region0: #{tile.8}
  #allocation0 [shape = 's32[1]{0}', space=sflag, size = 0x4, scoped, tag = 'scoped memory for tile.8']
  %s0 = inlined_call_operand.vmem [shape: f32[16], index: 0, kind: input, shape index: {}]
  %s1 = inlined_call_operand.vmem [shape: f32[8,16], index: 1, kind: output, shape index: {}]
  // Predicated region
  $region2: #{tile.8} parent=0 // pred_check
    _
  $region3: #{tile.8} parent=0 // pred_check_branch
    %3 = sbr.rel (0) target = $region5
  $region4: #{tile.8} parent=0 // pred_region
    _
  $region5: #{tile.8} parent=0 // pred_fallthru
    _
  %v4 = vld [vmem:[%s0] ss:$0 sm:$0xff]
  %5 = vst [vmem:[%s1] sm:$0xff] %v4

// kernel: tile.9
$region0: #{tile.9}
  %s0 = inlined_call_operand.vmem [shape: f32[8,16], index: 0, kind: input, shape index: {}]
  %s1 = inlined_call_operand.vmem [shape: f32[1,128], index: 1, kind: output, shape index: {}]
  $region1: #{tile.9} parent=0
    #allocation0 [shape = 'u8[4096]{0}', space=vmem, size = 0x1000, scoped, tag = 'scoped mem for output reshape']
    %v2 = vld [vmem:[%s0] sm:$0x1]
    %vm3 = vcmask 130048
    %4 = vst.msk [vmem:[#allocation0] sm:$0x1] %vm3, %v2
    %s5 = scalar_lea.vmem %s0, 7
    %v6 = vld [vmem:[%s5] sm:$0x1]
    %7 = vrot.lane.b32.xlu0 %v6, 112
    %v8 = vpop.permute.xlu0 %7
    %vm9 = vcmask 1048448
    %10 = vst.msk [vmem:[#allocation0] sm:$0x1] %vm9, %v8
    %s11 = scalar_lea.vmem %s0, 6
    %v12 = vld [vmem:[%s11] sm:$0x1]
    %13 = vrot.lane.b32.xlu0 %v12, 96
    %v14 = vpop.permute.xlu0 %13
    %vm15 = vcmask 917248
    %16 = vst.msk [vmem:[#allocation0] sm:$0x1] %vm15, %v14
    %s17 = scalar_lea.vmem %s0, 5
    %v18 = vld [vmem:[%s17] sm:$0x1]
    %19 = vrot.lane.b32.xlu0 %v18, 80
    %v20 = vpop.permute.xlu0 %19
    %vm21 = vcmask 786048
    %22 = vst.msk [vmem:[#allocation0] sm:$0x1] %vm21, %v20
    %s23 = scalar_lea.vmem %s0, 4
    %v24 = vld [vmem:[%s23] sm:$0x1]
    %25 = vrot.lane.b32.xlu0 %v24, 64
    %v26 = vpop.permute.xlu0 %25
    %vm27 = vcmask 654848
    %28 = vst.msk [vmem:[#allocation0] sm:$0x1] %vm27, %v26
    %s29 = scalar_lea.vmem %s0, 3
    %v30 = vld [vmem:[%s29] sm:$0x1]
    %31 = vrot.lane.b32.xlu0 %v30, 48
    %v32 = vpop.permute.xlu0 %31
    %vm33 = vcmask 523648
    %34 = vst.msk [vmem:[#allocation0] sm:$0x1] %vm33, %v32
    %s35 = scalar_lea.vmem %s0, 2
    %v36 = vld [vmem:[%s35] sm:$0x1]
    %37 = vrot.lane.b32.xlu0 %v36, 32
    %v38 = vpop.permute.xlu0 %37
    %vm39 = vcmask 392448
    %40 = vst.msk [vmem:[#allocation0] sm:$0x1] %vm39, %v38
    %s41 = scalar_lea.vmem %s0, 1
    %v42 = vld [vmem:[%s41] sm:$0x1]
    %43 = vrot.lane.b32.xlu0 %v42, 16
    %v44 = vpop.permute.xlu0 %43
    %vm45 = vcmask 261248
    %46 = vst.msk [vmem:[#allocation0] sm:$0x1] %vm45, %v44
    %s48 = sshllo.u32 0, 1
    %v50 = vld [vmem:[#allocation0] sm:%s48]
    %s51 = sshllo.u32 0, 1
    %52 = vst [vmem:[%s1] sm:%s51] %v50

// kernel: spiking_conv3d_forward.1
$region0: #{spiking_conv3d_forward.1}
  #allocation0 [shape = 'u32[]', space=smem, size = 0x4, offset = 0x4, fixed_abs, tag = 'smem constant byte address 0x4 - core index']
  #allocation1 [shape = 'u32[144,128]{1,0:T(1,128)}', space=vmem, size = 0x12000, scoped, tag = 'internal scratch']
  #allocation2 [shape = 'bf16[40,1152]{1,0:T(8,128)(2,1)}', space=vmem, size = 0x16800, scoped, tag = 'scratch operand']
  %s0 = inlined_call_operand.vmem [shape: bf16[2,2,62,128], index: 0, kind: input, shape index: {}]
  %s1 = inlined_call_operand.vmem [shape: bf16[1152,128], index: 1, kind: input, shape index: {}]
  %s2 = inlined_call_operand.vmem [shape: f32[1,128], index: 2, kind: input, shape index: {}]
  %s3 = inlined_call_operand.vmem [shape: bf16[2,80,128], index: 3, kind: output, shape index: {}]
  %s4 = sld [smem:[#allocation0]]
  $region45: #{spiking_conv3d_forward.1} parent=0
    _
  %s6 = ssub.s32 1, %s4
  %s7 = scalar_select 0, %s6, %s4
  loop: start=0, step=1, limit=6
  $region2: #{spiking_conv3d_forward.1} parent=0 // loop_pre_header
    _
  $region3: #{spiking_conv3d_forward.1} parent=0 // loop_header
    %s9 = sphi 0, %s13
    %p10 = scmp.ge.s32.totalorder %s9, 6
    %s16 = sphi 0, %s28
    %s17 = sphi 0, %s24
    %s18 = sphi 0, %s16
    %s19 = sphi 0, %s17
    %s20 = sphi 0, %s18
    %s21 = sphi 0, %s19
    %s33 = sphi 0, %s35
    %s36 = sphi 0, %s33
    %s37 = sphi 0, %s36
    %s53 = sphi 0, %s37
    %s57 = sphi 0, %s57
    %s59 = sphi 0, %s57
    %s60 = sphi 0, %s59
    %s74 = sphi 0, %s60
    %s78 = sphi 0, %s78
    %s80 = sphi 0, %s78
    %s81 = sphi 0, %s80
    %s95 = sphi 0, %s81
    %s103 = sphi 0, %s105
    %s106 = sphi 0, %s103
    %s107 = sphi 0, %s106
    %s123 = sphi 0, %s107
  $region4: #{spiking_conv3d_forward.1} parent=0 // loop_header_branch
    %12 = sbr.rel (%p10) target = $region8
  $region5: #{spiking_conv3d_forward.1} parent=0 // loop_body
    %s14 = ssub.s32 %s9, 1
    %s15 = ssub.s32 %s9, 2
    %s22 = sadd.s32 1, %s17
    %p23 = scmp.ge.s32.totalorder %s22, 2
    %s24 = scalar_select %p23, 0, %s22
    %s25 = sadd.s32 1, %s16
    %s26 = scalar_select %p23, %s25, %s16
    %p27 = scmp.ge.s32.totalorder %s26, 2
    %s28 = scalar_select %p27, 0, %s26
    %s29 = ssub.s32 %s16, %s28
    %s30 = ssub.s32 %s17, %s24
    %s31 = sor.u32 %s29, %s30
    %p32 = scmp.eq.s32.totalorder %s31, 0
    %s34 = sadd.s32 %s33, 1
    %s35 = scalar_select %p32, %s33, %s34
    %p38 = pneg %p32
    %p39 = scmp.eq.s32.totalorder %s9, 3
    %p40 = por %p38, %p39
    %p41 = scmp.ne.s32.totalorder %s33, %s36
    %p42 = scmp.eq.s32.totalorder %s9, 0
    %p43 = por %p41, %p42
    %p44 = scmp.ne.s32.totalorder %s33, %s36
    %p45 = scmp.eq.s32.totalorder %s14, 3
    %p46 = por %p44, %p45
    %p47 = scmp.ne.s32.totalorder %s36, %s37
    %p48 = scmp.eq.s32.totalorder %s14, 0
    %p49 = por %p47, %p48
    %p50 = scmp.ne.s32.totalorder %s36, %s37
    %p51 = scmp.eq.s32.totalorder %s15, 3
    %p52 = por %p50, %p51
    %p54 = scmp.ne.s32.totalorder %s37, %s53
    %p55 = scmp.eq.s32.totalorder %s15, 0
    %p56 = por %p54, %p55
    %s58 = sadd.s32 %s57, 1
    %p61 = scmp.eq.s32.totalorder %s9, 3
    %p62 = scmp.ne.s32.totalorder %s57, %s59
    %p63 = scmp.eq.s32.totalorder %s9, 0
    %p64 = por %p62, %p63
    %p65 = scmp.ne.s32.totalorder %s57, %s59
    %p66 = scmp.eq.s32.totalorder %s14, 3
    %p67 = por %p65, %p66
    %p68 = scmp.ne.s32.totalorder %s59, %s60
    %p69 = scmp.eq.s32.totalorder %s14, 0
    %p70 = por %p68, %p69
    %p71 = scmp.ne.s32.totalorder %s59, %s60
    %p72 = scmp.eq.s32.totalorder %s15, 3
    %p73 = por %p71, %p72
    %p75 = scmp.ne.s32.totalorder %s60, %s74
    %p76 = scmp.eq.s32.totalorder %s15, 0
    %p77 = por %p75, %p76
    %s79 = sadd.s32 %s78, 1
    %p82 = scmp.eq.s32.totalorder %s9, 3
    %p83 = scmp.ne.s32.totalorder %s78, %s80
    %p84 = scmp.eq.s32.totalorder %s9, 0
    %p85 = por %p83, %p84
    %p86 = scmp.ne.s32.totalorder %s78, %s80
    %p87 = scmp.eq.s32.totalorder %s14, 3
    %p88 = por %p86, %p87
    %p89 = scmp.ne.s32.totalorder %s80, %s81
    %p90 = scmp.eq.s32.totalorder %s14, 0
    %p91 = por %p89, %p90
    %p92 = scmp.ne.s32.totalorder %s80, %s81
    %p93 = scmp.eq.s32.totalorder %s15, 3
    %p94 = por %p92, %p93
    %p96 = scmp.ne.s32.totalorder %s81, %s95
    %p97 = scmp.eq.s32.totalorder %s15, 0
    %p98 = por %p96, %p97
    %s99 = ssub.s32 %s16, %s28
    %s100 = ssub.s32 %s17, %s24
    %s101 = sor.u32 %s99, %s100
    %p102 = scmp.eq.s32.totalorder %s101, 0
    %s104 = sadd.s32 %s103, 1
    %s105 = scalar_select %p102, %s103, %s104
    %p108 = pneg %p102
    %p109 = scmp.eq.s32.totalorder %s9, 3
    %p110 = por %p108, %p109
    %p111 = scmp.ne.s32.totalorder %s103, %s106
    %p112 = scmp.eq.s32.totalorder %s9, 0
    %p113 = por %p111, %p112
    %p114 = scmp.ne.s32.totalorder %s103, %s106
    %p115 = scmp.eq.s32.totalorder %s14, 3
    %p116 = por %p114, %p115
    %p117 = scmp.ne.s32.totalorder %s106, %s107
    %p118 = scmp.eq.s32.totalorder %s14, 0
    %p119 = por %p117, %p118
    %p120 = scmp.ne.s32.totalorder %s106, %s107
    %p121 = scmp.eq.s32.totalorder %s15, 3
    %p122 = por %p120, %p121
    %p124 = scmp.ne.s32.totalorder %s107, %s123
    %p125 = scmp.eq.s32.totalorder %s15, 0
    %p126 = por %p124, %p125
    %p127 = scmp.le.s32.totalorder 1, %s9
    %p128 = scmp.lt.s32.totalorder %s9, 5
    %p129 = pnand %p127, %p128
    %p130 = pneg %p129
    // Predicated region
    $region9: #{spiking_conv3d_forward.1} parent=5 // pred_check
      _
    $region10: #{spiking_conv3d_forward.1} parent=5 // pred_check_branch
      %132 = sbr.rel (%p129) target = $region12
    $region11: #{spiking_conv3d_forward.1} parent=5 // pred_region
      %s133 = ssub.s32 %s9, 1
      // Predicated region
      $region13: #{spiking_conv3d_forward.1} parent=11 // pred_check
        %p134 = pneg %p70
      $region14: #{spiking_conv3d_forward.1} parent=11 // pred_check_branch
        %136 = sbr.rel (%p134) target = $region16
      $region15: #{spiking_conv3d_forward.1} parent=11 // pred_region
        _
      $region16: #{spiking_conv3d_forward.1} parent=11 // pred_fallthru
        _
      // Predicated region
      $region17: #{spiking_conv3d_forward.1} parent=11 // pred_check
        %p137 = pneg %p91
      $region18: #{spiking_conv3d_forward.1} parent=11 // pred_check_branch
        %139 = sbr.rel (%p137) target = $region20
      $region19: #{spiking_conv3d_forward.1} parent=11 // pred_region
        _
      $region20: #{spiking_conv3d_forward.1} parent=11 // pred_fallthru
        _
    $region12: #{spiking_conv3d_forward.1} parent=5 // pred_fallthru
      _
    %p140 = scmp.lt.s32.totalorder %s9, 4
    // Predicated region
    $region21: #{spiking_conv3d_forward.1} parent=5 // pred_check
      %p141 = pneg %p140
    $region22: #{spiking_conv3d_forward.1} parent=5 // pred_check_branch
      %143 = sbr.rel (%p141) target = $region24
    $region23: #{spiking_conv3d_forward.1} parent=5 // pred_region
      // Predicated region
      $region25: #{spiking_conv3d_forward.1} parent=23 // pred_check
        %p144 = pneg %p43
      $region26: #{spiking_conv3d_forward.1} parent=23 // pred_check_branch
        %146 = sbr.rel (%p144) target = $region28
      $region27: #{spiking_conv3d_forward.1} parent=23 // pred_region
        %p147 = scmp.lt.s32.totalorder %s16, 1
        %s148 = scalar_select %p147, %s16, 1
        %p149 = scmp.lt.s32.totalorder %s17, 1
        %s150 = scalar_select %p149, %s17, 1
        %s151 = smul.addr %s150, 8
        %s152 = smul.addr %s148, 16
        %s153 = sadd.s32 %s151, %s152
        %s154 = smul.addr %s153, 4
        %s155 = scalar_lea.vmem %s0, %s154
      $region28: #{spiking_conv3d_forward.1} parent=23 // pred_fallthru
        _
    $region24: #{spiking_conv3d_forward.1} parent=5 // pred_fallthru
      _
    %p156 = scmp.le.s32.totalorder 1, %s9
    %p157 = scmp.lt.s32.totalorder %s9, 5
    %p158 = pnand %p156, %p157
    %p159 = pneg %p158
    // Predicated region
    $region29: #{spiking_conv3d_forward.1} parent=5 // pred_check
      _
    $region30: #{spiking_conv3d_forward.1} parent=5 // pred_check_branch
      %161 = sbr.rel (%p158) target = $region32
    $region31: #{spiking_conv3d_forward.1} parent=5 // pred_region
      %s162 = ssub.s32 %s9, 1
      %p163 = scmp.lt.s32.totalorder %s18, 1
      %s164 = scalar_select %p163, %s18, 1
      %p165 = scmp.lt.s32.totalorder %s19, 1
      %s166 = scalar_select %p165, %s19, 1
      %s167 = smul.addr %s166, 8
      %s168 = smul.addr %s164, 16
      %s169 = sadd.s32 %s167, %s168
      %s170 = smul.addr %s169, 4
      %s171 = scalar_lea.vmem %s0, %s170
      %p172 = pneg %p49
      %p173 = pneg %p46
      %p174 = pneg %p70
      %p175 = pneg %p67
      %p176 = pneg %p91
      %p177 = pneg %p88
      %p178 = pneg %p119
      %p179 = pneg %p116
      %s180 = smul.u32 5, %s19
      %p181 = scmp.lt.s32.totalorder %s18, 1
      %s182 = scalar_select %p181, %s18, 1
      %p183 = scmp.lt.s32.totalorder %s180, 9
      %s184 = scalar_select %p183, %s180, 9
      %s185 = smul.addr %s182, 10
      %s186 = sadd.s32 %s184, %s185
      %s187 = smul.addr %s186, 4
      %s188 = scalar_lea.vmem %s3, %s187
      %p189 = scmp.lt.s32.totalorder %s18, 1
      %s190 = scalar_select %p189, %s18, 1
      %p191 = scmp.lt.s32.totalorder %s19, 1
      %s192 = scalar_select %p191, %s19, 1
      %s193 = smul.addr %s192, 8
      %s194 = smul.addr %s190, 16
      %s195 = sadd.s32 %s193, %s194
      %s196 = smul.addr %s195, 4
      %s197 = scalar_lea.vmem %s0, %s196
      %s198 = smul.u32 5, %s19
      %p199 = scmp.lt.s32.totalorder %s18, 1
      %s200 = scalar_select %p199, %s18, 1
      %p201 = scmp.lt.s32.totalorder %s198, 9
      %s202 = scalar_select %p201, %s198, 9
      %s203 = smul.addr %s200, 10
      %s204 = sadd.s32 %s202, %s203
      %s205 = smul.addr %s204, 4
      %s206 = scalar_lea.vmem %s3, %s205
      %s207 = smul.u32 5, %s19
      %v209 = vld [vmem:[%s197] sm:$0xf]
      %v210 = vld [vmem:[%s197 + $0x4] sm:$0xf]
      %v211 = vld [vmem:[%s197 + $0x8] sm:$0xf]
      %v212 = vld [vmem:[%s197 + $0xc] sm:$0xf]
      %v213 = vld [vmem:[%s197 + $0x10] sm:$0xf]
      %v214 = vld [vmem:[%s197 + $0x14] sm:$0xf]
      %v215 = vld [vmem:[%s197 + $0x18] sm:$0xf]
      %v216 = vld [vmem:[%s197 + $0x1c] sm:$0x7]
      %217 = vst [vmem:[#allocation2] sm:$0xf] %v209
      %218 = vst [vmem:[#allocation2 + $0x24] sm:$0xf] %v210
      %219 = vst [vmem:[#allocation2 + $0x48] sm:$0xf] %v211
      %220 = vst [vmem:[#allocation2 + $0x6c] sm:$0xf] %v212
      %221 = vst [vmem:[#allocation2 + $0x90] sm:$0xf] %v213
      %vm222 = vsmask.f32 3328
      %vm223 = vsmask.f32 7440
      %vm224 = vmor %vm222, %vm223
      %v226 = vshrl.u32 %v209, 16
      %v228 = vrot.slane %v226, 4
      %v229 = vshll.u32 %v209, 16
      %v231 = vrot.slane %v229, 5
      %v232 = vor.u32 %v228, %v231
      %v233 = vrot.slane %v232, 4
      %v235 = vshll.u32 %v210, 16
      %v237 = vrot.slane %v235, 5
      %v238 = vsel %vm224, %v233, %v237
      %v239 = vshrl.u32 %v210, 16
      %v241 = vrot.slane %v239, 4
      %v242 = vor.u32 %v241, %v237
      %v243 = vrot.slane %v242, 4
      %v245 = vshll.u32 %v211, 16
      %v247 = vrot.slane %v245, 5
      %v248 = vsel %vm224, %v243, %v247
      %v249 = vshrl.u32 %v211, 16
      %v251 = vrot.slane %v249, 4
      %v252 = vor.u32 %v251, %v247
      %v253 = vrot.slane %v252, 4
      %v255 = vshll.u32 %v212, 16
      %v257 = vrot.slane %v255, 5
      %v258 = vsel %vm224, %v253, %v257
      %v259 = vshrl.u32 %v212, 16
      %v261 = vrot.slane %v259, 4
      %v262 = vor.u32 %v261, %v257
      %v263 = vrot.slane %v262, 4
      %v265 = vshll.u32 %v213, 16
      %v267 = vrot.slane %v265, 5
      %v268 = vsel %vm224, %v263, %v267
      %v269 = vshrl.u32 %v213, 16
      %v271 = vrot.slane %v269, 4
      %v272 = vor.u32 %v271, %v267
      %v273 = vrot.slane %v272, 4
      %v275 = vshll.u32 %v214, 16
      %v277 = vrot.slane %v275, 5
      %v278 = vsel %vm224, %v273, %v277
      %284 = vst [vmem:[#allocation2 + $0x4] sm:$0xf] %v238
      %285 = vst [vmem:[#allocation2 + $0x28] sm:$0xf] %v248
      %286 = vst [vmem:[#allocation2 + $0x4c] sm:$0xf] %v258
      %287 = vst [vmem:[#allocation2 + $0x70] sm:$0xf] %v268
      %288 = vst [vmem:[#allocation2 + $0x94] sm:$0xf] %v278
      %vm295 = vcmask 1042432
      %vm296 = vcmask 1046532
      %vm297 = vmor %vm295, %vm296
      %v298 = vrot.slane %v209, 5
      %v299 = vrot.slane %v298, 4
      %v300 = vrot.slane %v210, 5
      %v301 = vsel %vm297, %v299, %v300
      %v302 = vrot.slane %v300, 4
      %v303 = vrot.slane %v211, 5
      %v304 = vsel %vm297, %v302, %v303
      %v305 = vrot.slane %v303, 4
      %v306 = vrot.slane %v212, 5
      %v307 = vsel %vm297, %v305, %v306
      %v308 = vrot.slane %v306, 4
      %v309 = vrot.slane %v213, 5
      %v310 = vsel %vm297, %v308, %v309
      %v311 = vrot.slane %v309, 4
      %v312 = vrot.slane %v214, 5
      %v313 = vsel %vm297, %v311, %v312
      %319 = vst [vmem:[#allocation2 + $0x8] sm:$0xf] %v301
      %320 = vst [vmem:[#allocation2 + $0x2c] sm:$0xf] %v304
      %321 = vst [vmem:[#allocation2 + $0x50] sm:$0xf] %v307
      %322 = vst [vmem:[#allocation2 + $0x74] sm:$0xf] %v310
      %323 = vst [vmem:[#allocation2 + $0x98] sm:$0xf] %v313
      %v325 = vrot.slane %v312, 4
      %v326 = vrot.slane %v215, 5
      %v327 = vsel %vm297, %v325, %v326
      %329 = vst [vmem:[#allocation2 + $0xc] sm:$0xf] %v304
      %330 = vst [vmem:[#allocation2 + $0x30] sm:$0xf] %v307
      %331 = vst [vmem:[#allocation2 + $0x54] sm:$0xf] %v310
      %332 = vst [vmem:[#allocation2 + $0x78] sm:$0xf] %v313
      %333 = vst [vmem:[#allocation2 + $0x9c] sm:$0xf] %v327
      %vm334 = vsmask.f32 2304
      %vm335 = vsmask.f32 6416
      %vm336 = vmor %vm334, %vm335
      %v337 = vrot.slane %v239, 5
      %v338 = vrot.slane %v235, 6
      %v339 = vor.u32 %v337, %v338
      %v340 = vrot.slane %v339, 4
      %v341 = vrot.slane %v249, 5
      %v342 = vrot.slane %v245, 6
      %v343 = vor.u32 %v341, %v342
      %v344 = vsel %vm336, %v340, %v343
      %v345 = vrot.slane %v343, 4
      %v346 = vrot.slane %v259, 5
      %v347 = vrot.slane %v255, 6
      %v348 = vor.u32 %v346, %v347
      %v349 = vsel %vm336, %v345, %v348
      %v350 = vrot.slane %v348, 4
      %v351 = vrot.slane %v269, 5
      %v352 = vrot.slane %v265, 6
      %v353 = vor.u32 %v351, %v352
      %v354 = vsel %vm336, %v350, %v353
      %v355 = vrot.slane %v353, 4
      %v356 = vshrl.u32 %v214, 16
      %v358 = vrot.slane %v356, 5
      %v359 = vrot.slane %v275, 6
      %v360 = vor.u32 %v358, %v359
      %v361 = vsel %vm336, %v355, %v360
      %v362 = vrot.slane %v360, 4
      %v364 = vshrl.u32 %v215, 16
      %v366 = vrot.slane %v364, 5
      %v367 = vshll.u32 %v215, 16
      %v369 = vrot.slane %v367, 6
      %v370 = vor.u32 %v366, %v369
      %v371 = vsel %vm336, %v362, %v370
      %377 = vst [vmem:[#allocation2 + $0x10] sm:$0xf] %v344
      %378 = vst [vmem:[#allocation2 + $0x34] sm:$0xf] %v349
      %379 = vst [vmem:[#allocation2 + $0x58] sm:$0xf] %v354
      %380 = vst [vmem:[#allocation2 + $0x7c] sm:$0xf] %v361
      %381 = vst [vmem:[#allocation2 + $0xa0] sm:$0xf] %v371
      %vm382 = vcmask 1041408
      %vm383 = vcmask 1045508
      %vm384 = vmor %vm382, %vm383
      %v385 = vrot.slane %v210, 6
      %v386 = vrot.slane %v385, 4
      %v387 = vrot.slane %v211, 6
      %v388 = vsel %vm384, %v386, %v387
      %v389 = vrot.slane %v387, 4
      %v390 = vrot.slane %v212, 6
      %v391 = vsel %vm384, %v389, %v390
      %v392 = vrot.slane %v390, 4
      %v393 = vrot.slane %v213, 6
      %v394 = vsel %vm384, %v392, %v393
      %v395 = vrot.slane %v393, 4
      %v396 = vrot.slane %v214, 6
      %v397 = vsel %vm384, %v395, %v396
      %v398 = vrot.slane %v396, 4
      %v399 = vrot.slane %v215, 6
      %v400 = vsel %vm384, %v398, %v399
      %406 = vst [vmem:[#allocation2 + $0x14] sm:$0xf] %v388
      %407 = vst [vmem:[#allocation2 + $0x38] sm:$0xf] %v391
      %408 = vst [vmem:[#allocation2 + $0x5c] sm:$0xf] %v394
      %409 = vst [vmem:[#allocation2 + $0x80] sm:$0xf] %v397
      %410 = vst [vmem:[#allocation2 + $0xa4] sm:$0xf] %v400
      %v412 = vrot.slane %v399, 4
      %v413 = vrot.slane %v216, 6
      %v414 = vsel %vm384, %v412, %v413
      %416 = vst [vmem:[#allocation2 + $0x18] sm:$0xf] %v391
      %417 = vst [vmem:[#allocation2 + $0x3c] sm:$0xf] %v394
      %418 = vst [vmem:[#allocation2 + $0x60] sm:$0xf] %v397
      %419 = vst [vmem:[#allocation2 + $0x84] sm:$0xf] %v400
      %420 = vst [vmem:[#allocation2 + $0xa8] sm:$0xf] %v414
      %vm421 = vsmask.f32 1280
      %vm422 = vsmask.f32 5392
      %vm423 = vmor %vm421, %vm422
      %v424 = vrot.slane %v249, 6
      %v425 = vrot.slane %v245, 7
      %v426 = vor.u32 %v424, %v425
      %v427 = vrot.slane %v426, 4
      %v428 = vrot.slane %v259, 6
      %v429 = vrot.slane %v255, 7
      %v430 = vor.u32 %v428, %v429
      %v431 = vsel %vm423, %v427, %v430
      %v432 = vrot.slane %v430, 4
      %v433 = vrot.slane %v269, 6
      %v434 = vrot.slane %v265, 7
      %v435 = vor.u32 %v433, %v434
      %v436 = vsel %vm423, %v432, %v435
      %v437 = vrot.slane %v435, 4
      %v438 = vrot.slane %v356, 6
      %v439 = vrot.slane %v275, 7
      %v440 = vor.u32 %v438, %v439
      %v441 = vsel %vm423, %v437, %v440
      %v442 = vrot.slane %v440, 4
      %v443 = vrot.slane %v364, 6
      %v444 = vrot.slane %v367, 7
      %v445 = vor.u32 %v443, %v444
      %v446 = vsel %vm423, %v442, %v445
      %v447 = vrot.slane %v445, 4
      %v449 = vshrl.u32 %v216, 16
      %v451 = vrot.slane %v449, 6
      %v452 = vshll.u32 %v216, 16
      %v454 = vrot.slane %v452, 7
      %v455 = vor.u32 %v451, %v454
      %v456 = vsel %vm423, %v447, %v455
      %462 = vst [vmem:[#allocation2 + $0x1c] sm:$0xf] %v431
      %463 = vst [vmem:[#allocation2 + $0x40] sm:$0xf] %v436
      %464 = vst [vmem:[#allocation2 + $0x64] sm:$0xf] %v441
      %465 = vst [vmem:[#allocation2 + $0x88] sm:$0xf] %v446
      %466 = vst [vmem:[#allocation2 + $0xac] sm:$0xf] %v456
      %vm467 = vcmask 1040384
      %vm468 = vcmask 1044484
      %vm469 = vmor %vm467, %vm468
      %v470 = vrot.slane %v211, 7
      %v471 = vrot.slane %v470, 4
      %v472 = vrot.slane %v212, 7
      %v473 = vsel %vm469, %v471, %v472
      %v474 = vrot.slane %v472, 4
      %v475 = vrot.slane %v213, 7
      %v476 = vsel %vm469, %v474, %v475
      %v477 = vrot.slane %v475, 4
      %v478 = vrot.slane %v214, 7
      %v479 = vsel %vm469, %v477, %v478
      %v480 = vrot.slane %v478, 4
      %v481 = vrot.slane %v215, 7
      %v482 = vsel %vm469, %v480, %v481
      %v483 = vrot.slane %v481, 4
      %v484 = vrot.slane %v216, 7
      %v485 = vsel %vm469, %v483, %v484
      %491 = vst [vmem:[#allocation2 + $0x20] sm:$0xf] %v473
      %492 = vst [vmem:[#allocation2 + $0x44] sm:$0xf] %v476
      %493 = vst [vmem:[#allocation2 + $0x68] sm:$0xf] %v479
      %494 = vst [vmem:[#allocation2 + $0x8c] sm:$0xf] %v482
      %495 = vst [vmem:[#allocation2 + $0xb0] sm:$0xf] %v485
      %v496 = vld [vmem:[#allocation2] sm:$0xff]
      %v497 = vld [vmem:[#allocation2 + $0x8] sm:$0xff]
      %v498 = vld [vmem:[#allocation2 + $0x10] sm:$0xff]
      %v499 = vld [vmem:[#allocation2 + $0x18] sm:$0xff]
      %v500 = vld [vmem:[#allocation2 + $0x20] sm:$0xf]
      %v501 = vld [vmem:[#allocation2 + $0x24] sm:$0xff]
      %v502 = vld [vmem:[#allocation2 + $0x2c] sm:$0xff]
      %v503 = vld [vmem:[#allocation2 + $0x34] sm:$0xff]
      %v504 = vld [vmem:[#allocation2 + $0x3c] sm:$0xff]
      %v505 = vld [vmem:[#allocation2 + $0x44] sm:$0xf]
      %v506 = vld [vmem:[#allocation2 + $0x48] sm:$0xff]
      %v507 = vld [vmem:[#allocation2 + $0x50] sm:$0xff]
      %v508 = vld [vmem:[#allocation2 + $0x58] sm:$0xff]
      %v509 = vld [vmem:[#allocation2 + $0x60] sm:$0xff]
      %v510 = vld [vmem:[#allocation2 + $0x68] sm:$0xf]
      %v511 = vld [vmem:[#allocation2 + $0x6c] sm:$0xff]
      %v512 = vld [vmem:[#allocation2 + $0x74] sm:$0xff]
      %v513 = vld [vmem:[#allocation2 + $0x7c] sm:$0xff]
      %v514 = vld [vmem:[#allocation2 + $0x84] sm:$0xff]
      %v515 = vld [vmem:[#allocation2 + $0x8c] sm:$0xf]
      %v516 = vld [vmem:[#allocation2 + $0x90] sm:$0xff]
      %v517 = vld [vmem:[#allocation2 + $0x98] sm:$0xff]
      %v518 = vld [vmem:[#allocation2 + $0xa0] sm:$0xff]
      %v519 = vld [vmem:[#allocation2 + $0xa8] sm:$0xff]
      %v520 = vld [vmem:[#allocation2 + $0xb0] sm:$0xf]
      %v521 = vld [vmem:[%s1] sm:$0xf]
      %v522 = vld [vmem:[%s1 + $0x4] sm:$0xf]
      %v523 = vld [vmem:[%s1 + $0x8] sm:$0xf]
      %v524 = vld [vmem:[%s1 + $0xc] sm:$0xf]
      %v525 = vld [vmem:[%s1 + $0x10] sm:$0xf]
      %v526 = vld [vmem:[%s1 + $0x14] sm:$0xf]
      %v527 = vld [vmem:[%s1 + $0x18] sm:$0xf]
      %v528 = vld [vmem:[%s1 + $0x1c] sm:$0xf]
      %v529 = vld [vmem:[%s1 + $0x20] sm:$0xf]
      %v530 = vld [vmem:[%s1 + $0x24] sm:$0xf]
      %v531 = vld [vmem:[%s1 + $0x28] sm:$0xf]
      %v532 = vld [vmem:[%s1 + $0x2c] sm:$0xf]
      %v533 = vld [vmem:[%s1 + $0x30] sm:$0xf]
      %v534 = vld [vmem:[%s1 + $0x34] sm:$0xf]
      %v535 = vld [vmem:[%s1 + $0x38] sm:$0xf]
      %v536 = vld [vmem:[%s1 + $0x3c] sm:$0xf]
      %v537 = vld [vmem:[%s1 + $0x40] sm:$0xf]
      %v538 = vld [vmem:[%s1 + $0x44] sm:$0xf]
      %v539 = vld [vmem:[%s1 + $0x48] sm:$0xf]
      %v540 = vld [vmem:[%s1 + $0x4c] sm:$0xf]
      %v541 = vld [vmem:[%s1 + $0x50] sm:$0xf]
      %v542 = vld [vmem:[%s1 + $0x54] sm:$0xf]
      %v543 = vld [vmem:[%s1 + $0x58] sm:$0xf]
      %v544 = vld [vmem:[%s1 + $0x5c] sm:$0xf]
      %v545 = vld [vmem:[%s1 + $0x60] sm:$0xf]
      %v546 = vld [vmem:[%s1 + $0x64] sm:$0xf]
      %v547 = vld [vmem:[%s1 + $0x68] sm:$0xf]
      %v548 = vld [vmem:[%s1 + $0x6c] sm:$0xf]
      %v549 = vld [vmem:[%s1 + $0x70] sm:$0xf]
      %v550 = vld [vmem:[%s1 + $0x74] sm:$0xf]
      %v551 = vld [vmem:[%s1 + $0x78] sm:$0xf]
      %v552 = vld [vmem:[%s1 + $0x7c] sm:$0xf]
      %v553 = vld [vmem:[%s1 + $0x80] sm:$0xf]
      %v554 = vld [vmem:[%s1 + $0x84] sm:$0xf]
      %v555 = vld [vmem:[%s1 + $0x88] sm:$0xf]
      %v556 = vld [vmem:[%s1 + $0x8c] sm:$0xf]
      %v557 = vld [vmem:[%s1 + $0x90] sm:$0xf]
      %v558 = vld [vmem:[%s1 + $0x94] sm:$0xf]
      %v559 = vld [vmem:[%s1 + $0x98] sm:$0xf]
      %v560 = vld [vmem:[%s1 + $0x9c] sm:$0xf]
      %v561 = vld [vmem:[%s1 + $0xa0] sm:$0xf]
      %v562 = vld [vmem:[%s1 + $0xa4] sm:$0xf]
      %v563 = vld [vmem:[%s1 + $0xa8] sm:$0xf]
      %v564 = vld [vmem:[%s1 + $0xac] sm:$0xf]
      %v565 = vld [vmem:[%s1 + $0xb0] sm:$0xf]
      %v566 = vld [vmem:[%s1 + $0xb4] sm:$0xf]
      %v567 = vld [vmem:[%s1 + $0xb8] sm:$0xf]
      %v568 = vld [vmem:[%s1 + $0xbc] sm:$0xf]
      %v569 = vld [vmem:[%s1 + $0xc0] sm:$0xf]
      %v570 = vld [vmem:[%s1 + $0xc4] sm:$0xf]
      %v571 = vld [vmem:[%s1 + $0xc8] sm:$0xf]
      %v572 = vld [vmem:[%s1 + $0xcc] sm:$0xf]
      %v573 = vld [vmem:[%s1 + $0xd0] sm:$0xf]
      %v574 = vld [vmem:[%s1 + $0xd4] sm:$0xf]
      %v575 = vld [vmem:[%s1 + $0xd8] sm:$0xf]
      %v576 = vld [vmem:[%s1 + $0xdc] sm:$0xf]
      %v577 = vld [vmem:[%s1 + $0xe0] sm:$0xf]
      %v578 = vld [vmem:[%s1 + $0xe4] sm:$0xf]
      %v579 = vld [vmem:[%s1 + $0xe8] sm:$0xf]
      %v580 = vld [vmem:[%s1 + $0xec] sm:$0xf]
      %v581 = vld [vmem:[%s1 + $0xf0] sm:$0xf]
      %v582 = vld [vmem:[%s1 + $0xf4] sm:$0xf]
      %v583 = vld [vmem:[%s1 + $0xf8] sm:$0xf]
      %v584 = vld [vmem:[%s1 + $0xfc] sm:$0xf]
      %v585 = vld [vmem:[%s1 + $0x100] sm:$0xf]
      %v586 = vld [vmem:[%s1 + $0x104] sm:$0xf]
      %v587 = vld [vmem:[%s1 + $0x108] sm:$0xf]
      %v588 = vld [vmem:[%s1 + $0x10c] sm:$0xf]
      %v589 = vld [vmem:[%s1 + $0x110] sm:$0xf]
      %v590 = vld [vmem:[%s1 + $0x114] sm:$0xf]
      %v591 = vld [vmem:[%s1 + $0x118] sm:$0xf]
      %v592 = vld [vmem:[%s1 + $0x11c] sm:$0xf]
      %v593 = vld [vmem:[%s1 + $0x120] sm:$0xf]
      %v594 = vld [vmem:[%s1 + $0x124] sm:$0xf]
      %v595 = vld [vmem:[%s1 + $0x128] sm:$0xf]
      %v596 = vld [vmem:[%s1 + $0x12c] sm:$0xf]
      %v597 = vld [vmem:[%s1 + $0x130] sm:$0xf]
      %v598 = vld [vmem:[%s1 + $0x134] sm:$0xf]
      %v599 = vld [vmem:[%s1 + $0x138] sm:$0xf]
      %v600 = vld [vmem:[%s1 + $0x13c] sm:$0xf]
      %v601 = vld [vmem:[%s1 + $0x140] sm:$0xf]
      %v602 = vld [vmem:[%s1 + $0x144] sm:$0xf]
      %v603 = vld [vmem:[%s1 + $0x148] sm:$0xf]
      %v604 = vld [vmem:[%s1 + $0x14c] sm:$0xf]
      %v605 = vld [vmem:[%s1 + $0x150] sm:$0xf]
      %v606 = vld [vmem:[%s1 + $0x154] sm:$0xf]
      %v607 = vld [vmem:[%s1 + $0x158] sm:$0xf]
      %v608 = vld [vmem:[%s1 + $0x15c] sm:$0xf]
      %v609 = vld [vmem:[%s1 + $0x160] sm:$0xf]
      %v610 = vld [vmem:[%s1 + $0x164] sm:$0xf]
      %v611 = vld [vmem:[%s1 + $0x168] sm:$0xf]
      %v612 = vld [vmem:[%s1 + $0x16c] sm:$0xf]
      %v613 = vld [vmem:[%s1 + $0x170] sm:$0xf]
      %v614 = vld [vmem:[%s1 + $0x174] sm:$0xf]
      %v615 = vld [vmem:[%s1 + $0x178] sm:$0xf]
      %v616 = vld [vmem:[%s1 + $0x17c] sm:$0xf]
      %v617 = vld [vmem:[%s1 + $0x180] sm:$0xf]
      %v618 = vld [vmem:[%s1 + $0x184] sm:$0xf]
      %v619 = vld [vmem:[%s1 + $0x188] sm:$0xf]
      %v620 = vld [vmem:[%s1 + $0x18c] sm:$0xf]
      %v621 = vld [vmem:[%s1 + $0x190] sm:$0xf]
      %v622 = vld [vmem:[%s1 + $0x194] sm:$0xf]
      %v623 = vld [vmem:[%s1 + $0x198] sm:$0xf]
      %v624 = vld [vmem:[%s1 + $0x19c] sm:$0xf]
      %v625 = vld [vmem:[%s1 + $0x1a0] sm:$0xf]
      %v626 = vld [vmem:[%s1 + $0x1a4] sm:$0xf]
      %v627 = vld [vmem:[%s1 + $0x1a8] sm:$0xf]
      %v628 = vld [vmem:[%s1 + $0x1ac] sm:$0xf]
      %v629 = vld [vmem:[%s1 + $0x1b0] sm:$0xf]
      %v630 = vld [vmem:[%s1 + $0x1b4] sm:$0xf]
      %v631 = vld [vmem:[%s1 + $0x1b8] sm:$0xf]
      %v632 = vld [vmem:[%s1 + $0x1bc] sm:$0xf]
      %v633 = vld [vmem:[%s1 + $0x1c0] sm:$0xf]
      %v634 = vld [vmem:[%s1 + $0x1c4] sm:$0xf]
      %v635 = vld [vmem:[%s1 + $0x1c8] sm:$0xf]
      %v636 = vld [vmem:[%s1 + $0x1cc] sm:$0xf]
      %v637 = vld [vmem:[%s1 + $0x1d0] sm:$0xf]
      %v638 = vld [vmem:[%s1 + $0x1d4] sm:$0xf]
      %v639 = vld [vmem:[%s1 + $0x1d8] sm:$0xf]
      %v640 = vld [vmem:[%s1 + $0x1dc] sm:$0xf]
      %v641 = vld [vmem:[%s1 + $0x1e0] sm:$0xf]
      %v642 = vld [vmem:[%s1 + $0x1e4] sm:$0xf]
      %v643 = vld [vmem:[%s1 + $0x1e8] sm:$0xf]
      %v644 = vld [vmem:[%s1 + $0x1ec] sm:$0xf]
      %v645 = vld [vmem:[%s1 + $0x1f0] sm:$0xf]
      %v646 = vld [vmem:[%s1 + $0x1f4] sm:$0xf]
      %v647 = vld [vmem:[%s1 + $0x1f8] sm:$0xf]
      %v648 = vld [vmem:[%s1 + $0x1fc] sm:$0xf]
      %v649 = vld [vmem:[%s1 + $0x200] sm:$0xf]
      %v650 = vld [vmem:[%s1 + $0x204] sm:$0xf]
      %v651 = vld [vmem:[%s1 + $0x208] sm:$0xf]
      %v652 = vld [vmem:[%s1 + $0x20c] sm:$0xf]
      %v653 = vld [vmem:[%s1 + $0x210] sm:$0xf]
      %v654 = vld [vmem:[%s1 + $0x214] sm:$0xf]
      %v655 = vld [vmem:[%s1 + $0x218] sm:$0xf]
      %v656 = vld [vmem:[%s1 + $0x21c] sm:$0xf]
      %v657 = vld [vmem:[%s1 + $0x220] sm:$0xf]
      %v658 = vld [vmem:[%s1 + $0x224] sm:$0xf]
      %v659 = vld [vmem:[%s1 + $0x228] sm:$0xf]
      %v660 = vld [vmem:[%s1 + $0x22c] sm:$0xf]
      %v661 = vld [vmem:[%s1 + $0x230] sm:$0xf]
      %v662 = vld [vmem:[%s1 + $0x234] sm:$0xf]
      %v663 = vld [vmem:[%s1 + $0x238] sm:$0xf]
      %v664 = vld [vmem:[%s1 + $0x23c] sm:$0xf]
      %v690 = vunpack.c.l.b16 %v496
      %v691 = vunpack.c.h.b16 %v496
      %v692 = vunpack.c.l.b16 %v497
      %v693 = vunpack.c.h.b16 %v497
      %v694 = vunpack.c.l.b16 %v498
      %v695 = vunpack.c.h.b16 %v498
      %v696 = vunpack.c.l.b16 %v499
      %v697 = vunpack.c.h.b16 %v499
      %v698 = vunpack.c.l.b16 %v500
      %v699 = vunpack.c.l.b16 %v501
      %v700 = vunpack.c.h.b16 %v501
      %v701 = vunpack.c.l.b16 %v502
      %v702 = vunpack.c.h.b16 %v502
      %v703 = vunpack.c.l.b16 %v503
      %v704 = vunpack.c.h.b16 %v503
      %v705 = vunpack.c.l.b16 %v504
      %v706 = vunpack.c.h.b16 %v504
      %v707 = vunpack.c.l.b16 %v505
      %v708 = vunpack.c.l.b16 %v506
      %v709 = vunpack.c.h.b16 %v506
      %v710 = vunpack.c.l.b16 %v507
      %v711 = vunpack.c.h.b16 %v507
      %v712 = vunpack.c.l.b16 %v508
      %v713 = vunpack.c.h.b16 %v508
      %v714 = vunpack.c.l.b16 %v509
      %v715 = vunpack.c.h.b16 %v509
      %v716 = vunpack.c.l.b16 %v510
      %v717 = vunpack.c.l.b16 %v511
      %v718 = vunpack.c.h.b16 %v511
      %v719 = vunpack.c.l.b16 %v512
      %v720 = vunpack.c.h.b16 %v512
      %v721 = vunpack.c.l.b16 %v513
      %v722 = vunpack.c.h.b16 %v513
      %v723 = vunpack.c.l.b16 %v514
      %v724 = vunpack.c.h.b16 %v514
      %v725 = vunpack.c.l.b16 %v515
      %v726 = vunpack.c.l.b16 %v516
      %v727 = vunpack.c.h.b16 %v516
      %v728 = vunpack.c.l.b16 %v517
      %v729 = vunpack.c.h.b16 %v517
      %v730 = vunpack.c.l.b16 %v518
      %v731 = vunpack.c.h.b16 %v518
      %v732 = vunpack.c.l.b16 %v519
      %v733 = vunpack.c.h.b16 %v519
      %v734 = vunpack.c.l.b16 %v520
      %v735 = vpack.c.b16 %v699, %v690
      %v736 = vpack.c.b16 %v700, %v691
      %v737 = vpack.c.b16 %v701, %v692
      %v738 = vpack.c.b16 %v702, %v693
      %v739 = vpack.c.b16 %v703, %v694
      %v740 = vpack.c.b16 %v704, %v695
      %v741 = vpack.c.b16 %v705, %v696
      %v742 = vpack.c.b16 %v706, %v697
      %v743 = vpack.c.b16 %v707, %v698
      %v744 = vpack.c.b16 %v717, %v708
      %v745 = vpack.c.b16 %v718, %v709
      %v746 = vpack.c.b16 %v719, %v710
      %v747 = vpack.c.b16 %v720, %v711
      %v748 = vpack.c.b16 %v721, %v712
      %v749 = vpack.c.b16 %v722, %v713
      %v750 = vpack.c.b16 %v723, %v714
      %v751 = vpack.c.b16 %v724, %v715
      %v752 = vpack.c.b16 %v725, %v716
      %v753 = vpack.c.b16 %v726, %v726
      %v754 = vpack.c.b16 %v727, %v727
      %v755 = vpack.c.b16 %v728, %v728
      %v756 = vpack.c.b16 %v729, %v729
      %v757 = vpack.c.b16 %v730, %v730
      %v758 = vpack.c.b16 %v731, %v731
      %v759 = vpack.c.b16 %v732, %v732
      %v760 = vpack.c.b16 %v733, %v733
      %v761 = vpack.c.b16 %v734, %v734
      %v933 = vunpack.c.l.b16 %v521
      %v934 = vunpack.c.l.b16 %v522
      %v935 = vunpack.c.l.b16 %v523
      %v936 = vunpack.c.l.b16 %v524
      %v937 = vunpack.c.l.b16 %v525
      %v938 = vunpack.c.l.b16 %v526
      %v939 = vunpack.c.l.b16 %v527
      %v940 = vunpack.c.l.b16 %v528
      %v941 = vunpack.c.l.b16 %v529
      %v942 = vunpack.c.l.b16 %v530
      %v943 = vunpack.c.l.b16 %v531
      %v944 = vunpack.c.l.b16 %v532
      %v945 = vunpack.c.l.b16 %v533
      %v946 = vunpack.c.l.b16 %v534
      %v947 = vunpack.c.l.b16 %v535
      %v948 = vunpack.c.l.b16 %v536
      %v949 = vunpack.c.l.b16 %v537
      %v950 = vunpack.c.l.b16 %v538
      %v951 = vunpack.c.l.b16 %v539
      %v952 = vunpack.c.l.b16 %v540
      %v953 = vunpack.c.l.b16 %v541
      %v954 = vunpack.c.l.b16 %v542
      %v955 = vunpack.c.l.b16 %v543
      %v956 = vunpack.c.l.b16 %v544
      %v957 = vunpack.c.l.b16 %v545
      %v958 = vunpack.c.l.b16 %v546
      %v959 = vunpack.c.l.b16 %v547
      %v960 = vunpack.c.l.b16 %v548
      %v961 = vunpack.c.l.b16 %v549
      %v962 = vunpack.c.l.b16 %v550
      %v963 = vunpack.c.l.b16 %v551
      %v964 = vunpack.c.l.b16 %v552
      %v965 = vunpack.c.l.b16 %v553
      %v966 = vunpack.c.l.b16 %v554
      %v967 = vunpack.c.l.b16 %v555
      %v968 = vunpack.c.l.b16 %v556
      %v969 = vunpack.c.l.b16 %v557
      %v970 = vunpack.c.l.b16 %v558
      %v971 = vunpack.c.l.b16 %v559
      %v972 = vunpack.c.l.b16 %v560
      %v973 = vunpack.c.l.b16 %v561
      %v974 = vunpack.c.l.b16 %v562
      %v975 = vunpack.c.l.b16 %v563
      %v976 = vunpack.c.l.b16 %v564
      %v977 = vunpack.c.l.b16 %v565
      %v978 = vunpack.c.l.b16 %v566
      %v979 = vunpack.c.l.b16 %v567
      %v980 = vunpack.c.l.b16 %v568
      %v981 = vunpack.c.l.b16 %v569
      %v982 = vunpack.c.l.b16 %v570
      %v983 = vunpack.c.l.b16 %v571
      %v984 = vunpack.c.l.b16 %v572
      %v985 = vunpack.c.l.b16 %v573
      %v986 = vunpack.c.l.b16 %v574
      %v987 = vunpack.c.l.b16 %v575
      %v988 = vunpack.c.l.b16 %v576
      %v989 = vunpack.c.l.b16 %v577
      %v990 = vunpack.c.l.b16 %v578
      %v991 = vunpack.c.l.b16 %v579
      %v992 = vunpack.c.l.b16 %v580
      %v993 = vunpack.c.l.b16 %v581
      %v994 = vunpack.c.l.b16 %v582
      %v995 = vunpack.c.l.b16 %v583
      %v996 = vunpack.c.l.b16 %v584
      %v997 = vunpack.c.l.b16 %v585
      %v998 = vunpack.c.l.b16 %v586
      %v999 = vunpack.c.l.b16 %v587
      %v1000 = vunpack.c.l.b16 %v588
      %v1001 = vunpack.c.l.b16 %v589
      %v1002 = vunpack.c.l.b16 %v590
      %v1003 = vunpack.c.l.b16 %v591
      %v1004 = vunpack.c.l.b16 %v592
      %v1005 = vunpack.c.l.b16 %v593
      %v1006 = vunpack.c.l.b16 %v594
      %v1007 = vunpack.c.l.b16 %v595
      %v1008 = vunpack.c.l.b16 %v596
      %v1009 = vunpack.c.l.b16 %v597
      %v1010 = vunpack.c.l.b16 %v598
      %v1011 = vunpack.c.l.b16 %v599
      %v1012 = vunpack.c.l.b16 %v600
      %v1013 = vunpack.c.l.b16 %v601
      %v1014 = vunpack.c.l.b16 %v602
      %v1015 = vunpack.c.l.b16 %v603
      %v1016 = vunpack.c.l.b16 %v604
      %v1017 = vunpack.c.l.b16 %v605
      %v1018 = vunpack.c.l.b16 %v606
      %v1019 = vunpack.c.l.b16 %v607
      %v1020 = vunpack.c.l.b16 %v608
      %v1021 = vunpack.c.l.b16 %v609
      %v1022 = vunpack.c.l.b16 %v610
      %v1023 = vunpack.c.l.b16 %v611
      %v1024 = vunpack.c.l.b16 %v612
      %v1025 = vunpack.c.l.b16 %v613
      %v1026 = vunpack.c.l.b16 %v614
      %v1027 = vunpack.c.l.b16 %v615
      %v1028 = vunpack.c.l.b16 %v616
      %v1029 = vunpack.c.l.b16 %v617
      %v1030 = vunpack.c.l.b16 %v618
      %v1031 = vunpack.c.l.b16 %v619
      %v1032 = vunpack.c.l.b16 %v620
      %v1033 = vunpack.c.l.b16 %v621
      %v1034 = vunpack.c.l.b16 %v622
      %v1035 = vunpack.c.l.b16 %v623
      %v1036 = vunpack.c.l.b16 %v624
      %v1037 = vunpack.c.l.b16 %v625
      %v1038 = vunpack.c.l.b16 %v626
      %v1039 = vunpack.c.l.b16 %v627
      %v1040 = vunpack.c.l.b16 %v628
      %v1041 = vunpack.c.l.b16 %v629
      %v1042 = vunpack.c.l.b16 %v630
      %v1043 = vunpack.c.l.b16 %v631
      %v1044 = vunpack.c.l.b16 %v632
      %v1045 = vunpack.c.l.b16 %v633
      %v1046 = vunpack.c.l.b16 %v634
      %v1047 = vunpack.c.l.b16 %v635
      %v1048 = vunpack.c.l.b16 %v636
      %v1049 = vunpack.c.l.b16 %v637
      %v1050 = vunpack.c.l.b16 %v638
      %v1051 = vunpack.c.l.b16 %v639
      %v1052 = vunpack.c.l.b16 %v640
      %v1053 = vunpack.c.l.b16 %v641
      %v1054 = vunpack.c.l.b16 %v642
      %v1055 = vunpack.c.l.b16 %v643
      %v1056 = vunpack.c.l.b16 %v644
      %v1057 = vunpack.c.l.b16 %v645
      %v1058 = vunpack.c.l.b16 %v646
      %v1059 = vunpack.c.l.b16 %v647
      %v1060 = vunpack.c.l.b16 %v648
      %v1061 = vunpack.c.l.b16 %v649
      %v1062 = vunpack.c.l.b16 %v650
      %v1063 = vunpack.c.l.b16 %v651
      %v1064 = vunpack.c.l.b16 %v652
      %v1065 = vunpack.c.l.b16 %v653
      %v1066 = vunpack.c.l.b16 %v654
      %v1067 = vunpack.c.l.b16 %v655
      %v1068 = vunpack.c.l.b16 %v656
      %v1069 = vunpack.c.l.b16 %v657
      %v1070 = vunpack.c.l.b16 %v658
      %v1071 = vunpack.c.l.b16 %v659
      %v1072 = vunpack.c.l.b16 %v660
      %v1073 = vunpack.c.l.b16 %v661
      %v1074 = vunpack.c.l.b16 %v662
      %v1075 = vunpack.c.l.b16 %v663
      %v1076 = vunpack.c.l.b16 %v664
      %v1077 = vpack.c.b16 %v934, %v933
      %v1078 = vpack.c.b16 %v936, %v935
      %v1079 = vpack.c.b16 %v938, %v937
      %v1080 = vpack.c.b16 %v940, %v939
      %v1081 = vpack.c.b16 %v942, %v941
      %v1082 = vpack.c.b16 %v944, %v943
      %v1083 = vpack.c.b16 %v946, %v945
      %v1084 = vpack.c.b16 %v948, %v947
      %v1085 = vpack.c.b16 %v950, %v949
      %v1086 = vpack.c.b16 %v952, %v951
      %v1087 = vpack.c.b16 %v954, %v953
      %v1088 = vpack.c.b16 %v956, %v955
      %v1089 = vpack.c.b16 %v958, %v957
      %v1090 = vpack.c.b16 %v960, %v959
      %v1091 = vpack.c.b16 %v962, %v961
      %v1092 = vpack.c.b16 %v964, %v963
      %v1093 = vpack.c.b16 %v966, %v965
      %v1094 = vpack.c.b16 %v968, %v967
      %v1095 = vpack.c.b16 %v970, %v969
      %v1096 = vpack.c.b16 %v972, %v971
      %v1097 = vpack.c.b16 %v974, %v973
      %v1098 = vpack.c.b16 %v976, %v975
      %v1099 = vpack.c.b16 %v978, %v977
      %v1100 = vpack.c.b16 %v980, %v979
      %v1101 = vpack.c.b16 %v982, %v981
      %v1102 = vpack.c.b16 %v984, %v983
      %v1103 = vpack.c.b16 %v986, %v985
      %v1104 = vpack.c.b16 %v988, %v987
      %v1105 = vpack.c.b16 %v990, %v989
      %v1106 = vpack.c.b16 %v992, %v991
      %v1107 = vpack.c.b16 %v994, %v993
      %v1108 = vpack.c.b16 %v996, %v995
      %v1109 = vpack.c.b16 %v998, %v997
      %v1110 = vpack.c.b16 %v1000, %v999
      %v1111 = vpack.c.b16 %v1002, %v1001
      %v1112 = vpack.c.b16 %v1004, %v1003
      %v1113 = vpack.c.b16 %v1006, %v1005
      %v1114 = vpack.c.b16 %v1008, %v1007
      %v1115 = vpack.c.b16 %v1010, %v1009
      %v1116 = vpack.c.b16 %v1012, %v1011
      %v1117 = vpack.c.b16 %v1014, %v1013
      %v1118 = vpack.c.b16 %v1016, %v1015
      %v1119 = vpack.c.b16 %v1018, %v1017
      %v1120 = vpack.c.b16 %v1020, %v1019
      %v1121 = vpack.c.b16 %v1022, %v1021
      %v1122 = vpack.c.b16 %v1024, %v1023
      %v1123 = vpack.c.b16 %v1026, %v1025
      %v1124 = vpack.c.b16 %v1028, %v1027
      %v1125 = vpack.c.b16 %v1030, %v1029
      %v1126 = vpack.c.b16 %v1032, %v1031
      %v1127 = vpack.c.b16 %v1034, %v1033
      %v1128 = vpack.c.b16 %v1036, %v1035
      %v1129 = vpack.c.b16 %v1038, %v1037
      %v1130 = vpack.c.b16 %v1040, %v1039
      %v1131 = vpack.c.b16 %v1042, %v1041
      %v1132 = vpack.c.b16 %v1044, %v1043
      %v1133 = vpack.c.b16 %v1046, %v1045
      %v1134 = vpack.c.b16 %v1048, %v1047
      %v1135 = vpack.c.b16 %v1050, %v1049
      %v1136 = vpack.c.b16 %v1052, %v1051
      %v1137 = vpack.c.b16 %v1054, %v1053
      %v1138 = vpack.c.b16 %v1056, %v1055
      %v1139 = vpack.c.b16 %v1058, %v1057
      %v1140 = vpack.c.b16 %v1060, %v1059
      %v1141 = vpack.c.b16 %v1062, %v1061
      %v1142 = vpack.c.b16 %v1064, %v1063
      %v1143 = vpack.c.b16 %v1066, %v1065
      %v1144 = vpack.c.b16 %v1068, %v1067
      %v1145 = vpack.c.b16 %v1070, %v1069
      %v1146 = vpack.c.b16 %v1072, %v1071
      %v1147 = vpack.c.b16 %v1074, %v1073
      %v1148 = vpack.c.b16 %v1076, %v1075
      %1221 = vmatprep.subr.bf16.mxu0 0
      %1222 = vmatpush1.bf16.msra.mxu0 %v1077
      %1223 = vmatprep.subr.bf16.mxu0 0
      %1224 = vmatpush1.bf16.msra.mxu0 %v1078
      %1225 = vmatprep.subr.bf16.mxu0 0
      %1226 = vmatpush1.bf16.msra.mxu0 %v1079
      %1227 = vmatprep.subr.bf16.mxu0 0
      %1228 = vmatpush1.bf16.msra.mxu0 %v1080
      %1229 = vmatprep.subr.bf16.mxu0 0
      %1230 = vmatpush1.bf16.msra.mxu0 %v1081
      %1231 = vmatprep.subr.bf16.mxu0 0
      %1232 = vmatpush1.bf16.msra.mxu0 %v1082
      %1233 = vmatprep.subr.bf16.mxu0 0
      %1234 = vmatpush1.bf16.msra.mxu0 %v1083
      %1235 = vmatprep.subr.bf16.mxu0 0
      %1236 = vmatpush1.bf16.msra.mxu0 %v1084
      %1237 = vmatprep.subr.bf16.mxu0 0
      %1238 = vmatpush1.bf16.msra.mxu0 %v1085
      %1239 = vmatprep.subr.bf16.mxu0 0
      %1240 = vmatpush1.bf16.msra.mxu0 %v1086
      %1241 = vmatprep.subr.bf16.mxu0 0
      %1242 = vmatpush1.bf16.msra.mxu0 %v1087
      %1243 = vmatprep.subr.bf16.mxu0 0
      %1244 = vmatpush1.bf16.msra.mxu0 %v1088
      %1245 = vmatprep.subr.bf16.mxu0 0
      %1246 = vmatpush1.bf16.msra.mxu0 %v1089
      %1247 = vmatprep.subr.bf16.mxu0 0
      %1248 = vmatpush1.bf16.msra.mxu0 %v1090
      %1249 = vmatprep.subr.bf16.mxu0 0
      %1250 = vmatpush1.bf16.msra.mxu0 %v1091
      %1251 = vmatprep.subr.bf16.mxu0 0
      %1252 = vmatpush1.bf16.msra.mxu0 %v1092
      %1253 = vmatprep.mubr.bf16.mxu0 %v736
      %1254 = vmatmul.mubr.bf16.gmra.mrb[0].mxu0 %v735
      %v1255 = vpop.f32.mrb[0].mxu0
      %v1256 = vadd.f32 0.0, %v1255
      %v1257 = vpop.f32.mrb[0].mxu0
      %v1258 = vpop.f32.mrb[0].mxu0
      %v1259 = vadd.f32 0.0, %v1258
      %v1260 = vpop.f32.mrb[0].mxu0
      %1261 = vmatprep.mubr.bf16.mxu0 %v745
      %1262 = vmatmul.mubr.bf16.gmra.mrb[0].mxu0 %v744
      %v1263 = vpop.f32.mrb[0].mxu0
      %v1264 = vadd.f32 0.0, %v1263
      %v1265 = vpop.f32.mrb[0].mxu0
      %v1266 = vpop.f32.mrb[0].mxu0
      %v1267 = vadd.f32 0.0, %v1266
      %v1268 = vpop.f32.mrb[0].mxu0
      %1269 = vmatprep.mubr.bf16.mxu0 %v754
      %1270 = vmatmul.mubr.bf16.gmra.mrb[0].mxu0 %v753
      %v1271 = vpop.f32.mrb[0].mxu0
      %v1272 = vadd.f32 0.0, %v1271
      %v1273 = vpop.f32.mrb[0].mxu0
      %v1274 = vpop.f32.mrb[0].mxu0
      %v1275 = vpop.f32.mrb[0].mxu0
      %1276 = vdwg.mxu0
      %1277 = vmatprep.subr.bf16.mxu0 0
      %1278 = vmatpush1.bf16.msra.mxu0 %v1093
      %1279 = vmatprep.subr.bf16.mxu0 0
      %1280 = vmatpush1.bf16.msra.mxu0 %v1094
      %1281 = vmatprep.subr.bf16.mxu0 0
      %1282 = vmatpush1.bf16.msra.mxu0 %v1095
      %1283 = vmatprep.subr.bf16.mxu0 0
      %1284 = vmatpush1.bf16.msra.mxu0 %v1096
      %1285 = vmatprep.subr.bf16.mxu0 0
      %1286 = vmatpush1.bf16.msra.mxu0 %v1097
      %1287 = vmatprep.subr.bf16.mxu0 0
      %1288 = vmatpush1.bf16.msra.mxu0 %v1098
      %1289 = vmatprep.subr.bf16.mxu0 0
      %1290 = vmatpush1.bf16.msra.mxu0 %v1099
      %1291 = vmatprep.subr.bf16.mxu0 0
      %1292 = vmatpush1.bf16.msra.mxu0 %v1100
      %1293 = vmatprep.subr.bf16.mxu0 0
      %1294 = vmatpush1.bf16.msra.mxu0 %v1101
      %1295 = vmatprep.subr.bf16.mxu0 0
      %1296 = vmatpush1.bf16.msra.mxu0 %v1102
      %1297 = vmatprep.subr.bf16.mxu0 0
      %1298 = vmatpush1.bf16.msra.mxu0 %v1103
      %1299 = vmatprep.subr.bf16.mxu0 0
      %1300 = vmatpush1.bf16.msra.mxu0 %v1104
      %1301 = vmatprep.subr.bf16.mxu0 0
      %1302 = vmatpush1.bf16.msra.mxu0 %v1105
      %1303 = vmatprep.subr.bf16.mxu0 0
      %1304 = vmatpush1.bf16.msra.mxu0 %v1106
      %1305 = vmatprep.subr.bf16.mxu0 0
      %1306 = vmatpush1.bf16.msra.mxu0 %v1107
      %1307 = vmatprep.subr.bf16.mxu0 0
      %1308 = vmatpush1.bf16.msra.mxu0 %v1108
      %1309 = vmatprep.mubr.bf16.mxu0 %v738
      %1310 = vmatmul.mubr.bf16.gmra.mrb[0].mxu0 %v737
      %v1311 = vpop.f32.mrb[0].mxu0
      %v1312 = vadd.f32 %v1256, %v1311
      %v1313 = vpop.f32.mrb[0].mxu0
      %v1314 = vpop.f32.mrb[0].mxu0
      %v1315 = vadd.f32 %v1259, %v1314
      %v1316 = vpop.f32.mrb[0].mxu0
      %1317 = vmatprep.mubr.bf16.mxu0 %v747
      %1318 = vmatmul.mubr.bf16.gmra.mrb[0].mxu0 %v746
      %v1319 = vpop.f32.mrb[0].mxu0
      %v1320 = vadd.f32 %v1264, %v1319
      %v1321 = vpop.f32.mrb[0].mxu0
      %v1322 = vpop.f32.mrb[0].mxu0
      %v1323 = vadd.f32 %v1267, %v1322
      %v1324 = vpop.f32.mrb[0].mxu0
      %1325 = vmatprep.mubr.bf16.mxu0 %v756
      %1326 = vmatmul.mubr.bf16.gmra.mrb[0].mxu0 %v755
      %v1327 = vpop.f32.mrb[0].mxu0
      %v1328 = vadd.f32 %v1272, %v1327
      %v1329 = vpop.f32.mrb[0].mxu0
      %v1330 = vpop.f32.mrb[0].mxu0
      %v1331 = vpop.f32.mrb[0].mxu0
      %1332 = vdwg.mxu0
      %1333 = vmatprep.subr.bf16.mxu0 0
      %1334 = vmatpush1.bf16.msra.mxu0 %v1109
      %1335 = vmatprep.subr.bf16.mxu0 0
      %1336 = vmatpush1.bf16.msra.mxu0 %v1110
      %1337 = vmatprep.subr.bf16.mxu0 0
      %1338 = vmatpush1.bf16.msra.mxu0 %v1111
      %1339 = vmatprep.subr.bf16.mxu0 0
      %1340 = vmatpush1.bf16.msra.mxu0 %v1112
      %1341 = vmatprep.subr.bf16.mxu0 0
      %1342 = vmatpush1.bf16.msra.mxu0 %v1113
      %1343 = vmatprep.subr.bf16.mxu0 0
      %1344 = vmatpush1.bf16.msra.mxu0 %v1114
      %1345 = vmatprep.subr.bf16.mxu0 0
      %1346 = vmatpush1.bf16.msra.mxu0 %v1115
      %1347 = vmatprep.subr.bf16.mxu0 0
      %1348 = vmatpush1.bf16.msra.mxu0 %v1116
      %1349 = vmatprep.subr.bf16.mxu0 0
      %1350 = vmatpush1.bf16.msra.mxu0 %v1117
      %1351 = vmatprep.subr.bf16.mxu0 0
      %1352 = vmatpush1.bf16.msra.mxu0 %v1118
      %1353 = vmatprep.subr.bf16.mxu0 0
      %1354 = vmatpush1.bf16.msra.mxu0 %v1119
      %1355 = vmatprep.subr.bf16.mxu0 0
      %1356 = vmatpush1.bf16.msra.mxu0 %v1120
      %1357 = vmatprep.subr.bf16.mxu0 0
      %1358 = vmatpush1.bf16.msra.mxu0 %v1121
      %1359 = vmatprep.subr.bf16.mxu0 0
      %1360 = vmatpush1.bf16.msra.mxu0 %v1122
      %1361 = vmatprep.subr.bf16.mxu0 0
      %1362 = vmatpush1.bf16.msra.mxu0 %v1123
      %1363 = vmatprep.subr.bf16.mxu0 0
      %1364 = vmatpush1.bf16.msra.mxu0 %v1124
      %1365 = vmatprep.mubr.bf16.mxu0 %v740
      %1366 = vmatmul.mubr.bf16.gmra.mrb[0].mxu0 %v739
      %v1367 = vpop.f32.mrb[0].mxu0
      %v1368 = vadd.f32 %v1312, %v1367
      %v1369 = vpop.f32.mrb[0].mxu0
      %v1370 = vpop.f32.mrb[0].mxu0
      %v1371 = vadd.f32 %v1315, %v1370
      %v1372 = vpop.f32.mrb[0].mxu0
      %1373 = vmatprep.mubr.bf16.mxu0 %v749
      %1374 = vmatmul.mubr.bf16.gmra.mrb[0].mxu0 %v748
      %v1375 = vpop.f32.mrb[0].mxu0
      %v1376 = vadd.f32 %v1320, %v1375
      %v1377 = vpop.f32.mrb[0].mxu0
      %v1378 = vpop.f32.mrb[0].mxu0
      %v1379 = vadd.f32 %v1323, %v1378
      %v1380 = vpop.f32.mrb[0].mxu0
      %1381 = vmatprep.mubr.bf16.mxu0 %v758
      %1382 = vmatmul.mubr.bf16.gmra.mrb[0].mxu0 %v757
      %v1383 = vpop.f32.mrb[0].mxu0
      %v1384 = vadd.f32 %v1328, %v1383
      %v1385 = vpop.f32.mrb[0].mxu0
      %v1386 = vpop.f32.mrb[0].mxu0
      %v1387 = vpop.f32.mrb[0].mxu0
      %1388 = vdwg.mxu0
      %1389 = vmatprep.subr.bf16.mxu0 0
      %1390 = vmatpush1.bf16.msra.mxu0 %v1125
      %1391 = vmatprep.subr.bf16.mxu0 0
      %1392 = vmatpush1.bf16.msra.mxu0 %v1126
      %1393 = vmatprep.subr.bf16.mxu0 0
      %1394 = vmatpush1.bf16.msra.mxu0 %v1127
      %1395 = vmatprep.subr.bf16.mxu0 0
      %1396 = vmatpush1.bf16.msra.mxu0 %v1128
      %1397 = vmatprep.subr.bf16.mxu0 0
      %1398 = vmatpush1.bf16.msra.mxu0 %v1129
      %1399 = vmatprep.subr.bf16.mxu0 0
      %1400 = vmatpush1.bf16.msra.mxu0 %v1130
      %1401 = vmatprep.subr.bf16.mxu0 0
      %1402 = vmatpush1.bf16.msra.mxu0 %v1131
      %1403 = vmatprep.subr.bf16.mxu0 0
      %1404 = vmatpush1.bf16.msra.mxu0 %v1132
      %1405 = vmatprep.subr.bf16.mxu0 0
      %1406 = vmatpush1.bf16.msra.mxu0 %v1133
      %1407 = vmatprep.subr.bf16.mxu0 0
      %1408 = vmatpush1.bf16.msra.mxu0 %v1134
      %1409 = vmatprep.subr.bf16.mxu0 0
      %1410 = vmatpush1.bf16.msra.mxu0 %v1135
      %1411 = vmatprep.subr.bf16.mxu0 0
      %1412 = vmatpush1.bf16.msra.mxu0 %v1136
      %1413 = vmatprep.subr.bf16.mxu0 0
      %1414 = vmatpush1.bf16.msra.mxu0 %v1137
      %1415 = vmatprep.subr.bf16.mxu0 0
      %1416 = vmatpush1.bf16.msra.mxu0 %v1138
      %1417 = vmatprep.subr.bf16.mxu0 0
      %1418 = vmatpush1.bf16.msra.mxu0 %v1139
      %1419 = vmatprep.subr.bf16.mxu0 0
      %1420 = vmatpush1.bf16.msra.mxu0 %v1140
      %1421 = vmatprep.mubr.bf16.mxu0 %v742
      %1422 = vmatmul.mubr.bf16.gmra.mrb[0].mxu0 %v741
      %v1423 = vpop.f32.mrb[0].mxu0
      %v1424 = vadd.f32 %v1368, %v1423
      %v1425 = vpop.f32.mrb[0].mxu0
      %v1426 = vpop.f32.mrb[0].mxu0
      %v1427 = vadd.f32 %v1371, %v1426
      %v1428 = vpop.f32.mrb[0].mxu0
      %1429 = vmatprep.mubr.bf16.mxu0 %v751
      %1430 = vmatmul.mubr.bf16.gmra.mrb[0].mxu0 %v750
      %v1431 = vpop.f32.mrb[0].mxu0
      %v1432 = vadd.f32 %v1376, %v1431
      %v1433 = vpop.f32.mrb[0].mxu0
      %v1434 = vpop.f32.mrb[0].mxu0
      %v1435 = vadd.f32 %v1379, %v1434
      %v1436 = vpop.f32.mrb[0].mxu0
      %1437 = vmatprep.mubr.bf16.mxu0 %v760
      %1438 = vmatmul.mubr.bf16.gmra.mrb[0].mxu0 %v759
      %v1439 = vpop.f32.mrb[0].mxu0
      %v1440 = vadd.f32 %v1384, %v1439
      %v1441 = vpop.f32.mrb[0].mxu0
      %v1442 = vpop.f32.mrb[0].mxu0
      %v1443 = vpop.f32.mrb[0].mxu0
      %1444 = vdwg.mxu0
      %1445 = vmatprep.subr.bf16.mxu0 0
      %1446 = vmatpush1.bf16.msra.mxu0 %v1141
      %1447 = vmatprep.subr.bf16.mxu0 0
      %1448 = vmatpush1.bf16.msra.mxu0 %v1142
      %1449 = vmatprep.subr.bf16.mxu0 0
      %1450 = vmatpush1.bf16.msra.mxu0 %v1143
      %1451 = vmatprep.subr.bf16.mxu0 0
      %1452 = vmatpush1.bf16.msra.mxu0 %v1144
      %1453 = vmatprep.subr.bf16.mxu0 0
      %1454 = vmatpush1.bf16.msra.mxu0 %v1145
      %1455 = vmatprep.subr.bf16.mxu0 0
      %1456 = vmatpush1.bf16.msra.mxu0 %v1146
      %1457 = vmatprep.subr.bf16.mxu0 0
      %1458 = vmatpush1.bf16.msra.mxu0 %v1147
      %1459 = vmatprep.subr.bf16.mxu0 0
      %1460 = vmatpush1.bf16.msra.mxu0 %v1148
      %1461 = vmatprep.subr.bf16.mxu0 0
      %1462 = vmatpush1.bf16.msra.mxu0 0
      %1463 = vmatprep.subr.bf16.mxu0 0
      %1464 = vmatpush1.bf16.msra.mxu0 0
      %1465 = vmatprep.subr.bf16.mxu0 0
      %1466 = vmatpush1.bf16.msra.mxu0 0
      %1467 = vmatprep.subr.bf16.mxu0 0
      %1468 = vmatpush1.bf16.msra.mxu0 0
      %1469 = vmatprep.subr.bf16.mxu0 0
      %1470 = vmatpush1.bf16.msra.mxu0 0
      %1471 = vmatprep.subr.bf16.mxu0 0
      %1472 = vmatpush1.bf16.msra.mxu0 0
      %1473 = vmatprep.subr.bf16.mxu0 0
      %1474 = vmatpush1.bf16.msra.mxu0 0
      %1475 = vmatprep.subr.bf16.mxu0 0
      %1476 = vmatpush1.bf16.msra.mxu0 0
      %1477 = vmatprep.mubr.bf16.mxu0 0
      %1478 = vmatmul.mubr.bf16.gmra.mrb[0].mxu0 %v743
      %v1479 = vpop.f32.mrb[0].mxu0
      %v1480 = vadd.f32 %v1424, %v1479
      %v1481 = vpop.f32.mrb[0].mxu0
      %v1482 = vpop.f32.mrb[0].mxu0
      %v1483 = vadd.f32 %v1427, %v1482
      %v1484 = vpop.f32.mrb[0].mxu0
      %1485 = vmatprep.mubr.bf16.mxu0 0
      %1486 = vmatmul.mubr.bf16.gmra.mrb[0].mxu0 %v752
      %v1487 = vpop.f32.mrb[0].mxu0
      %v1488 = vadd.f32 %v1432, %v1487
      %v1489 = vpop.f32.mrb[0].mxu0
      %v1490 = vpop.f32.mrb[0].mxu0
      %v1491 = vadd.f32 %v1435, %v1490
      %v1492 = vpop.f32.mrb[0].mxu0
      %1493 = vmatprep.mubr.bf16.mxu0 0
      %1494 = vmatmul.mubr.bf16.gmra.mrb[0].mxu0 %v761
      %v1495 = vpop.f32.mrb[0].mxu0
      %v1496 = vadd.f32 %v1440, %v1495
      %v1497 = vpop.f32.mrb[0].mxu0
      %v1498 = vpop.f32.mrb[0].mxu0
      %v1499 = vpop.f32.mrb[0].mxu0
      %1500 = vdwg.mxu0
      %v1501 = vld [vmem:[%s2] sm:$0x1]
      %v1503 = vlaneseq
      %v1504 = vshrl.u32 %v1503, 7
      %v1505 = vsub.s32 0, %v1504
      %v1506 = vrot.slane %v1501, %v1505
      %vm1508 = vcmp.ge.f32.partialorder %v1480, %v1506
      %vm1509 = vcmp.ge.f32.partialorder %v1483, %v1506
      %vm1510 = vcmp.ge.f32.partialorder %v1488, %v1506
      %vm1511 = vcmp.ge.f32.partialorder %v1491, %v1506
      %vm1512 = vcmp.ge.f32.partialorder %v1496, %v1506
      %v1513 = vsel %vm1508, 1, 0
      %v1514 = vsel %vm1509, 1, 0
      %v1515 = vsel %vm1510, 1, 0
      %v1516 = vsel %vm1511, 1, 0
      %v1517 = vsel %vm1512, 1, 0
      %v1518 = vcvt.s32.f32 %v1513
      %v1519 = vcvt.s32.f32 %v1514
      %v1520 = vcvt.s32.f32 %v1515
      %v1521 = vcvt.s32.f32 %v1516
      %v1522 = vcvt.s32.f32 %v1517
      %v1523 = vpack.c.bf16 %v1519, %v1518
      %v1524 = vpack.c.bf16 %v1521, %v1520
      %v1525 = vpack.c.bf16 %v1522, %v1522
      %v1529 = vunpack.c.l.b16 %v1523
      %v1530 = vunpack.c.h.b16 %v1523
      %v1531 = vunpack.c.l.b16 %v1524
      %v1532 = vunpack.c.h.b16 %v1524
      %v1533 = vunpack.c.l.b16 %v1525
      %v1534 = vpack.c.b16 %v1529, %v1529
      %v1535 = vpack.c.b16 %v1530, %v1530
      %v1536 = vpack.c.b16 %v1531, %v1531
      %v1537 = vpack.c.b16 %v1532, %v1532
      %v1538 = vpack.c.b16 %v1533, %v1533
      %1544 = vst [vmem:[%s206] sm:$0xf] %v1534
      %1545 = vst [vmem:[%s206 + $0x4] sm:$0xf] %v1535
      %1546 = vst [vmem:[%s206 + $0x8] sm:$0xf] %v1536
      %1547 = vst [vmem:[%s206 + $0xc] sm:$0xf] %v1537
      %1548 = vst [vmem:[%s206 + $0x10] sm:$0xf] %v1538
      %s1549 = smul.u32 5, %s19
      %p1550 = scmp.lt.s32.totalorder %s18, 1
      %s1551 = scalar_select %p1550, %s18, 1
      %p1552 = scmp.lt.s32.totalorder %s1549, 9
      %s1553 = scalar_select %p1552, %s1549, 9
      %s1554 = smul.addr %s1551, 10
      %s1555 = sadd.s32 %s1553, %s1554
      %s1556 = smul.addr %s1555, 4
      %s1557 = scalar_lea.vmem %s3, %s1556
      // Predicated region
      $region33: #{spiking_conv3d_forward.1} parent=31 // pred_check
        %p1558 = pneg %p116
      $region34: #{spiking_conv3d_forward.1} parent=31 // pred_check_branch
        %1560 = sbr.rel (%p1558) target = $region36
      $region35: #{spiking_conv3d_forward.1} parent=31 // pred_region
        %s1561 = smul.u32 5, %s19
      $region36: #{spiking_conv3d_forward.1} parent=31 // pred_fallthru
        _
    $region32: #{spiking_conv3d_forward.1} parent=5 // pred_fallthru
      _
    %p1562 = scmp.le.s32.totalorder 2, %s9
    // Predicated region
    $region37: #{spiking_conv3d_forward.1} parent=5 // pred_check
      %p1563 = pneg %p1562
    $region38: #{spiking_conv3d_forward.1} parent=5 // pred_check_branch
      %1565 = sbr.rel (%p1563) target = $region40
    $region39: #{spiking_conv3d_forward.1} parent=5 // pred_region
      %s1566 = ssub.s32 %s9, 2
      // Predicated region
      $region41: #{spiking_conv3d_forward.1} parent=39 // pred_check
        %p1567 = pneg %p122
      $region42: #{spiking_conv3d_forward.1} parent=39 // pred_check_branch
        %1569 = sbr.rel (%p1567) target = $region44
      $region43: #{spiking_conv3d_forward.1} parent=39 // pred_region
        %s1570 = smul.u32 5, %s21
        %p1571 = scmp.lt.s32.totalorder %s20, 1
        %s1572 = scalar_select %p1571, %s20, 1
        %p1573 = scmp.lt.s32.totalorder %s1570, 9
        %s1574 = scalar_select %p1573, %s1570, 9
        %s1575 = smul.addr %s1572, 10
        %s1576 = sadd.s32 %s1574, %s1575
        %s1577 = smul.addr %s1576, 4
        %s1578 = scalar_lea.vmem %s3, %s1577
      $region44: #{spiking_conv3d_forward.1} parent=39 // pred_fallthru
        _
    $region40: #{spiking_conv3d_forward.1} parent=5 // pred_fallthru
      _
  $region6: #{spiking_conv3d_forward.1} parent=0 // loop_footer
    %s13 = sadd.s32 1, %s9
  $region7: #{spiking_conv3d_forward.1} parent=0 // loop_footer_branch
    %8 = sbr.rel target = $region3
  $region8: #{spiking_conv3d_forward.1} parent=0 // loop_exit
    _

</llo_original>
